<compile_context>
chip_gen: v6e
topology: v6e:2x2x1
jax: 0.10.0
libtpu: 0.0.40
codegen_flags: <defaults>
</compile_context>

<pallas_src>
import functools

import jax
import jax.numpy as jnp
from jax.experimental import pallas as pl
from jax.experimental.pallas import tpu as pltpu


def _round_up(a, b):
    return (a + b - 1) // b * b


# ---------------------------------------------------------------------------
# Generation-aware VMEM budgeting (v5e/v6e: 128 MiB; v7x: 64 MiB per TensorCore).
# ---------------------------------------------------------------------------
@functools.lru_cache(maxsize=None)
def _vmem_capacity_bytes():
    try:
        cap = int(getattr(pltpu.get_tpu_info(), "vmem_capacity_bytes", 0) or 0)
        if cap > 0:
            return cap
    except Exception:
        pass
    return 64 * 1024 * 1024          # conservative default (v7x per-TC VMEM)


def _vmem_limit_bytes():
    # leave ~25% headroom for Mosaic-internal scratch
    return (_vmem_capacity_bytes() * 3) // 4


def _tile_budget_bytes():
    # fraction of the scoped limit used for pipeline buffers
    return (_vmem_limit_bytes() * 4) // 5


_TM_MAX = 2048


def _pick_tm(m, stream_bytes_per_row, resident_bytes):
    """Largest multiple-of-8 row tile whose double-buffered streams fit the budget."""
    tm = min(_TM_MAX, _round_up(m, 8))
    if m > 8:                       # keep >= 2 grid steps so both v7x TCs get work
        tm = min(tm, _round_up(-(-m // 2), 8))
    avail = _tile_budget_bytes() - resident_bytes
    if avail > 0:
        fit = (avail // (2 * stream_bytes_per_row)) // 8 * 8   # 2x = double buffering
        tm = min(tm, max(fit, 8))
    return max(tm, 8)


# ---------------------------------------------------------------------------
# Fused 1x1-conv (matmul) + folded-BN bias + optional shortcut + optional ReLU.
# ---------------------------------------------------------------------------
def _mm_bn_kernel(x_ref, w_ref, b_ref, o_ref, *, relu):
    acc = jnp.dot(x_ref[...], w_ref[...], preferred_element_type=jnp.float32)
    acc = acc + b_ref[...]
    if relu:
        acc = jnp.maximum(acc, 0.0)
    o_ref[...] = acc.astype(o_ref.dtype)


def _mm_bn_res_kernel(x_ref, w_ref, b_ref, r_ref, o_ref, *, relu):
    acc = jnp.dot(x_ref[...], w_ref[...], preferred_element_type=jnp.float32)
    acc = acc + b_ref[...] + r_ref[...].astype(jnp.float32)   # bf16 residual, f32 add
    if relu:
        acc = jnp.maximum(acc, 0.0)
    o_ref[...] = acc.astype(o_ref.dtype)


def _mm_bn_dual_kernel(x_ref, w_ref, b_ref, xd_ref, wd_ref, o_ref, *, relu):
    acc = jnp.dot(x_ref[...], w_ref[...], preferred_element_type=jnp.float32)
    acc = acc + jnp.dot(xd_ref[...], wd_ref[...], preferred_element_type=jnp.float32)
    acc = acc + b_ref[...]
    if relu:
        acc = jnp.maximum(acc, 0.0)
    o_ref[...] = acc.astype(o_ref.dtype)


def matmul_bn_act(x, w_scaled, bias, *, residual=None, dual=None, relu=True,
                  out_dtype=jnp.float32):
    """act(x @ w_scaled + bias [+ residual] [+ xd @ wd]) as one Pallas kernel.

    x:(M,K), w_scaled:(K,N) with BN scale pre-folded, bias:(N,) f32.
    X / W / residual / xd / wd stream in bf16; MXU accumulates f32; f32 epilogue.
    """
    m, k = x.shape
    k2, n = w_scaled.shape
    assert k == k2
    out_bytes = jnp.dtype(out_dtype).itemsize

    # exact per-row stream bytes and resident bytes for the tile chooser
    row_bytes = k * 2 + n * out_bytes
    resident = 2 * (k * n * 2) + 2 * n * 4
    if dual is not None:
        xd, wd = dual
        kd = xd.shape[1]
        assert xd.shape[0] == m and wd.shape == (kd, n)
        row_bytes += kd * 2
        resident += 2 * (kd * n * 2)
    if residual is not None:
        assert residual.shape == (m, n)
        row_bytes += n * 2

    tm = _pick_tm(m, row_bytes, resident)
    grid = (pl.cdiv(m, tm),)        # no jnp.pad: boundary block is masked by Pallas

    args = [x.astype(jnp.bfloat16), w_scaled.astype(jnp.bfloat16),
            bias.reshape(1, n).astype(jnp.float32)]
    in_specs = [
        pl.BlockSpec((tm, k), lambda i: (i, 0)),      # X tile (bf16)
        pl.BlockSpec((k, n), lambda i: (0, 0)),       # resident W (bf16, scale folded)
        pl.BlockSpec((1, n), lambda i: (0, 0)),       # folded BN bias (f32)
    ]
    # TODO(synk): add K/N grid tiling + f32 accumulator scratch if the resident
    #             weights ever outgrow the VMEM budget.
    if dual is not None:
        args += [dual[0].astype(jnp.bfloat16), dual[1].astype(jnp.bfloat16)]
        in_specs += [pl.BlockSpec((tm, kd), lambda i: (i, 0)),   # strided input tile
                     pl.BlockSpec((kd, n), lambda i: (0, 0))]    # resident Wd
        kernel = functools.partial(_mm_bn_dual_kernel, relu=relu)
    elif residual is not None:
        args.append(residual.astype(jnp.bfloat16))               # bf16 residual stream
        in_specs.append(pl.BlockSpec((tm, n), lambda i: (i, 0)))
        kernel = functools.partial(_mm_bn_res_kernel, relu=relu)
    else:
        kernel = functools.partial(_mm_bn_kernel, relu=relu)

    return pl.pallas_call(
        kernel,
        out_shape=jax.ShapeDtypeStruct((m, n), out_dtype),
        grid_spec=pl.GridSpec(
            grid=grid,
            in_specs=in_specs,
            out_specs=pl.BlockSpec((tm, n), lambda i: (i, 0)),
        ),
        compiler_params=pltpu.CompilerParams(
            dimension_semantics=("parallel",),
            vmem_limit_bytes=_vmem_limit_bytes(),
        ),
    )(*args)


# ---------------------------------------------------------------------------
# Fused 3x3 conv (pad=1, stride) + folded-BN + ReLU, without HBM im2col.
# ---------------------------------------------------------------------------
def _conv3x3_kernel(x_ref, w_ref, b_ref, o_ref, *, taps, ho, wo):
    # x_ref: (1, P*Hq, Wq, C1) f32 phase planes (resident per image)
    # w_ref: (9, C1, C2) bf16 tap weights (scale folded);  b_ref: (1, C2) f32
    # o_ref: (1, ho*wo, C2)
    c1 = x_ref.shape[-1]
    acc = None
    for k, (r0, c0) in enumerate(taps):            # statically unrolled 9-tap reduction
        win = x_ref[0, r0:r0 + ho, c0:c0 + wo, :]                 # (ho, wo, C1) f32
        x2 = win.reshape(ho * wo, c1).astype(jnp.bfloat16)        # wo % 8 == 0 by construction
        d = jnp.dot(x2, w_ref[k], preferred_element_type=jnp.float32)
        acc = d if acc is None else acc + d
    out = jnp.maximum(acc + b_ref[...], 0.0)
    o_ref[0] = out.astype(o_ref.dtype)


def conv2_3x3_bn_relu(x_nhwc, w_taps, bias, stride):
    """3x3 / pad=1 / stride conv + folded BN + ReLU.

    The padded activation is space-to-depth'd into stride^2 phase planes in the
    wrapper (one XLA pass), DMA'd to VMEM once per image, and the 9 taps are
    accumulated inside the kernel from shifted static windows of that resident
    block — the previous 9x im2col HBM expansion is gone.
    """
    n, h, w, c1 = x_nhwc.shape
    c2 = w_taps.shape[2]
    s = int(stride)
    assert s in (1, 2), "ResNet bottleneck conv2 uses stride 1 or 2"
    ho = (h - 1) // s + 1
    wo = (w - 1) // s + 1
    wo_pad = _round_up(wo, 8)        # keeps the in-kernel (ho,wo,c)->(ho*wo,c) reshape tile-aligned

    hp = _round_up((ho - 1) * s + 3, s)
    wp = _round_up((wo_pad - 1) * s + 3, s)
    # Phase planes are kept f32 so the shifted (sublane-unaligned) tap windows stay
    # on the well-supported 32-bit layout path; they are read from HBM once per image.
    xp = jnp.pad(x_nhwc.astype(jnp.float32),
                 ((0, 0), (1, hp - h - 1), (1, wp - w - 1), (0, 0)))
    hq, wq = hp // s, wp // s
    if s == 1:
        xph = xp                                                  # (n, hq, wq, c1)
    else:
        xph = xp.reshape(n, hq, s, wq, s, c1).transpose(0, 2, 4, 1, 3, 5)
        xph = xph.reshape(n, s * s * hq, wq, c1)

    taps = []
    for ky in range(3):
        for kx in range(3):
            p = (ky % s) * s + (kx % s)
            taps.append((p * hq + ky // s, kx // s))
    taps = tuple(taps)

    m2 = ho * wo_pad
    out = pl.pallas_call(
        functools.partial(_conv3x3_kernel, taps=taps, ho=ho, wo=wo_pad),
        out_shape=jax.ShapeDtypeStruct((n, m2, c2), jnp.bfloat16),
        grid_spec=pl.GridSpec(
            grid=(n,),                                            # one image per step
            in_specs=[
                pl.BlockSpec((1, xph.shape[1], wq, c1), lambda i: (i, 0, 0, 0)),
                pl.BlockSpec((9, c1, c2), lambda i: (0, 0, 0)),   # resident tap weights
                pl.BlockSpec((1, c2), lambda i: (0, 0)),
            ],
            out_specs=pl.BlockSpec((1, m2, c2), lambda i: (i, 0, 0)),
        ),
        compiler_params=pltpu.CompilerParams(
            dimension_semantics=("parallel",),
            vmem_limit_bytes=_vmem_limit_bytes(),
        ),
    )(xph, w_taps.astype(jnp.bfloat16), bias.reshape(1, c2).astype(jnp.float32))

    out = out.reshape(n, ho, wo_pad, c2)
    if wo_pad != wo:
        out = out[:, :, :wo, :]
    return out


# ---------------------------------------------------------------------------
# BatchNorm folding (inference mode) and parameter construction.
# ---------------------------------------------------------------------------
def _bn_fold(gamma, beta, mean, var, eps=1e-5):
    scale = gamma / jnp.sqrt(var + eps)
    return scale, beta - mean * scale


def make_params(key, in_planes, planes, channels_1, channels_2, stride):
    expansion = 4
    out_planes = expansion * planes
    keys = jax.random.split(key, 16)

    def bn(kg, kb, km, kv, c):
        gamma = 1.0 + 0.1 * jax.random.normal(kg, (c,), jnp.float32)
        beta = 0.1 * jax.random.normal(kb, (c,), jnp.float32)
        mean = 0.05 * jax.random.normal(km, (c,), jnp.float32)
        var = 1.0 + 0.1 * jnp.abs(jax.random.normal(kv, (c,), jnp.float32))
        return gamma, beta, mean, var

    p = {}
    p["w1"] = 0.1 * jax.random.normal(keys[0], (channels_1, in_planes, 1, 1), jnp.float32)
    p["bn1"] = bn(keys[1], keys[2], keys[3], keys[4], channels_1)
    p["w2"] = 0.1 * jax.random.normal(keys[5], (channels_2, channels_1, 3, 3), jnp.float32)
    p["bn2"] = bn(keys[6], keys[7], keys[8], keys[9], channels_2)
    p["w3"] = 0.1 * jax.random.normal(keys[10], (out_planes, channels_2, 1, 1), jnp.float32)
    p["bn3"] = bn(keys[11], keys[12], keys[13], keys[14], out_planes)

    p["has_downsample"] = (stride != 1) or (in_planes != out_planes)
    if p["has_downsample"]:
        dkeys = jax.random.split(keys[15], 5)
        p["wd"] = 0.1 * jax.random.normal(dkeys[0], (out_planes, in_planes, 1, 1), jnp.float32)
        p["bnd"] = bn(dkeys[1], dkeys[2], dkeys[3], dkeys[4], out_planes)
    return p


# ---------------------------------------------------------------------------
# Forward pass (matches Bottleneck_flops.forward semantics, NCHW in/out).
# ---------------------------------------------------------------------------
def bottleneck_forward(x_nchw, params, stride, has_downsample):
    x = jnp.transpose(x_nchw, (0, 2, 3, 1))        # NHWC: channels on the lane axis
    n, h, w, cin = x.shape

    # fold BN scale into the conv weights once per call
    s1, b1 = _bn_fold(*params["bn1"])
    w1 = params["w1"].reshape(-1, cin).T * s1[None, :]             # (Cin, C1)
    s2, b2 = _bn_fold(*params["bn2"])
    w2 = jnp.transpose(params["w2"], (2, 3, 1, 0))                 # (3, 3, C1, C2)
    w2 = (w2 * s2).reshape(9, w2.shape[2], -1)                     # (9, C1, C2)
    s3, b3 = _bn_fold(*params["bn3"])
    cout, c2 = params["w3"].shape[0], params["w3"].shape[1]
    w3 = params["w3"].reshape(cout, c2).T * s3[None, :]            # (C2, Cout)
    c1 = w1.shape[1]

    # conv1 (1x1) + bn1 + relu  -> bf16 activation
    out1 = matmul_bn_act(x.reshape(-1, cin), w1, b1, relu=True,
                         out_dtype=jnp.bfloat16).reshape(n, h, w, c1)

    # conv2 (3x3, stride, pad=1) + bn2 + relu  (no HBM im2col)
    out2 = conv2_3x3_bn_relu(out1, w2, b2, stride)                 # (N, Ho, Wo, C2) bf16
    _, ho, wo, _ = out2.shape
    out2_2d = out2.reshape(-1, c2)

    # conv3 (1x1) + bn3 + shortcut + relu — one fused kernel
    if has_downsample:
        sd, bd = _bn_fold(*params["bnd"])
        wd = params["wd"].reshape(cout, cin).T * sd[None, :]       # (Cin, Cout)
        xd = x[:, ::stride, ::stride, :].reshape(-1, cin)          # 1x1 strided conv sampling
        out3 = matmul_bn_act(out2_2d, w3, b3 + bd, dual=(xd, wd), relu=True,
                             out_dtype=jnp.float32)
    else:
        assert stride == 1 and cin == cout, \
            "identity shortcut requires stride == 1 and in_planes == expansion*planes"
        out3 = matmul_bn_act(out2_2d, w3, b3, residual=x.reshape(-1, cout),
                             relu=True, out_dtype=jnp.float32)

    out3 = out3.reshape(n, ho, wo, cout)
    return jnp.transpose(out3, (0, 3, 1, 2))       # back to NCHW


if __name__ == "__main__":
    key = jax.random.PRNGKey(0)
    k_param, k_x = jax.random.split(key)

    # small shapes consistent with the module
    batch, in_planes, planes = 2, 8, 4
    channels_1, channels_2, stride = 8, 8, 2
    H = W = 16

    params = make_params(k_param, in_planes, planes, channels_1, channels_2, stride)
    has_ds = params.pop("has_downsample")
    x = jax.random.normal(k_x, (batch, in_planes, H, W), jnp.float32)  # NCHW like PyTorch

    fwd = jax.jit(functools.partial(bottleneck_forward, stride=stride,
                                    has_downsample=has_ds))
    out = fwd(x, params)
    jax.block_until_ready(out)

    expected_shape = (batch, 4 * planes, H // stride, W // stride)
    assert out.shape == expected_shape, (out.shape, expected_shape)
    assert bool(jnp.all(jnp.isfinite(out)))
    print("KERNEL_OK")
</pallas_src>

<mosaic_0001>
module attributes {stable_mosaic.version = 11 : i64} {
  func.func @_mm_bn_kernel(%arg0: i32, %arg1: memref<256x8xbf16, #tpu.memory_space<vmem>>, %arg2: memref<8x8xbf16, #tpu.memory_space<vmem>>, %arg3: memref<1x8xf32, #tpu.memory_space<vmem>>, %arg4: memref<256x8xbf16, #tpu.memory_space<vmem>>) attributes {dimension_semantics = [#tpu.dimension_semantics<parallel>], iteration_bounds = array<i64: 2>, scalar_prefetch = 0 : i64, scratch_operands = 0 : i64, tpu.core_type = #tpu.core_type<tc>, window_params = [{transform_indices = @transform_0, window_bounds = array<i64: 256, 8>}, {pipeline_mode = #tpu.pipeline_mode<synchronous>, transform_indices = @transform_1, window_bounds = array<i64: 8, 8>}, {pipeline_mode = #tpu.pipeline_mode<synchronous>, transform_indices = @transform_2, window_bounds = array<i64: 1, 8>}, {transform_indices = @transform_3, window_bounds = array<i64: 256, 8>}]} {
    %c0 = arith.constant 0 : index
    %c0_0 = arith.constant 0 : index
    %0 = vector.load %arg1[%c0, %c0_0] : memref<256x8xbf16, #tpu.memory_space<vmem>>, vector<256x8xbf16>
    %c0_1 = arith.constant 0 : index
    %c0_2 = arith.constant 0 : index
    %1 = vector.load %arg2[%c0_1, %c0_2] : memref<8x8xbf16, #tpu.memory_space<vmem>>, vector<8x8xbf16>
    %cst = arith.constant dense<0.000000e+00> : vector<256x8xf32>
    %2 = tpu.matmul %0, %1, %cst {dimension_numbers = #tpu.dot_dimension_numbers<[1], [0], [0], [1], [0, 0, 1, 1], [], []>} : vector<256x8xbf16>, vector<8x8xbf16>, vector<256x8xf32> -> vector<256x8xf32>
    %c0_3 = arith.constant 0 : index
    %c0_4 = arith.constant 0 : index
    %3 = vector.load %arg3[%c0_3, %c0_4] : memref<1x8xf32, #tpu.memory_space<vmem>>, vector<1x8xf32>
    %4 = vector.broadcast %3 : vector<1x8xf32> to vector<256x8xf32>
    %5 = arith.addf %2, %4 : vector<256x8xf32>
    %cst_5 = arith.constant 0.000000e+00 : f32
    %6 = vector.broadcast %cst_5 : f32 to vector<256x8xf32>
    %7 = arith.maximumf %5, %6 : vector<256x8xf32>
    %8 = arith.truncf %7 : vector<256x8xf32> to vector<256x8xbf16>
    %c0_6 = arith.constant 0 : index
    %c0_7 = arith.constant 0 : index
    %9 = vector.load %arg4[%c0_6, %c0_7] : memref<256x8xbf16, #tpu.memory_space<vmem>>, vector<256x8xbf16>
    tpu.vector_store %arg4[%c0_6, %c0_7], %8 {strides = array<i32>} : memref<256x8xbf16, #tpu.memory_space<vmem>>, vector<256x8xbf16>,
    return
  }
  func.func @transform_0(%arg0: i32) -> (i32, i32) {
    %c0_i32 = arith.constant 0 : i32
    %c0_i32_0 = arith.constant 0 : i32
    return %arg0, %c0_i32 : i32, i32
  }
  func.func @transform_1(%arg0: i32) -> (i32, i32) {
    %c0_i32 = arith.constant 0 : i32
    %c0_i32_0 = arith.constant 0 : i32
    %c0_i32_1 = arith.constant 0 : i32
    return %c0_i32, %c0_i32_0 : i32, i32
  }
  func.func @transform_2(%arg0: i32) -> (i32, i32) {
    %c0_i32 = arith.constant 0 : i32
    %c0_i32_0 = arith.constant 0 : i32
    %c0_i32_1 = arith.constant 0 : i32
    return %c0_i32, %c0_i32_0 : i32, i32
  }
  func.func @transform_3(%arg0: i32) -> (i32, i32) {
    %c0_i32 = arith.constant 0 : i32
    %c0_i32_0 = arith.constant 0 : i32
    return %arg0, %c0_i32 : i32, i32
  }
}

module attributes {stable_mosaic.version = 11 : i64} {
  func.func @_conv3x3_kernel(%arg0: i32, %arg1: memref<1x36x9x8xf32, #tpu.memory_space<vmem>>, %arg2: memref<9x8x8xbf16, #tpu.memory_space<vmem>>, %arg3: memref<1x8xf32, #tpu.memory_space<vmem>>, %arg4: memref<1x64x8xbf16, #tpu.memory_space<vmem>>) attributes {dimension_semantics = [#tpu.dimension_semantics<parallel>], iteration_bounds = array<i64: 2>, scalar_prefetch = 0 : i64, scratch_operands = 0 : i64, tpu.core_type = #tpu.core_type<tc>, window_params = [{transform_indices = @transform_0, window_bounds = array<i64: 1, 36, 9, 8>}, {pipeline_mode = #tpu.pipeline_mode<synchronous>, transform_indices = @transform_1, window_bounds = array<i64: 9, 8, 8>}, {pipeline_mode = #tpu.pipeline_mode<synchronous>, transform_indices = @transform_2, window_bounds = array<i64: 1, 8>}, {transform_indices = @transform_3, window_bounds = array<i64: 1, 64, 8>}]} {
    %c0 = arith.constant 0 : index
    %c0_0 = arith.constant 0 : index
    %c0_1 = arith.constant 0 : index
    %c0_2 = arith.constant 0 : index
    %0 = vector.load %arg1[%c0, %c0_0, %c0_1, %c0_2] : memref<1x36x9x8xf32, #tpu.memory_space<vmem>>, vector<1x8x8x8xf32>
    %1 = vector.shape_cast %0 : vector<1x8x8x8xf32> to vector<8x8x8xf32>
    %2 = vector.shape_cast %1 : vector<8x8x8xf32> to vector<64x8xf32>
    %3 = arith.truncf %2 : vector<64x8xf32> to vector<64x8xbf16>
    %c0_3 = arith.constant 0 : index
    %c0_4 = arith.constant 0 : index
    %c0_5 = arith.constant 0 : index
    %4 = vector.load %arg2[%c0_3, %c0_4, %c0_5] : memref<9x8x8xbf16, #tpu.memory_space<vmem>>, vector<1x8x8xbf16>
    %5 = vector.shape_cast %4 : vector<1x8x8xbf16> to vector<8x8xbf16>
    %cst = arith.constant dense<0.000000e+00> : vector<64x8xf32>
    %6 = tpu.matmul %3, %5, %cst {dimension_numbers = #tpu.dot_dimension_numbers<[1], [0], [0], [1], [0, 0, 1, 1], [], []>} : vector<64x8xbf16>, vector<8x8xbf16>, vector<64x8xf32> -> vector<64x8xf32>
    %c0_6 = arith.constant 0 : index
    %c9 = arith.constant 9 : index
    %c0_7 = arith.constant 0 : index
    %c0_8 = arith.constant 0 : index
    %7 = vector.load %arg1[%c0_6, %c9, %c0_7, %c0_8] : memref<1x36x9x8xf32, #tpu.memory_space<vmem>>, vector<1x8x8x8xf32>
    %8 = vector.shape_cast %7 : vector<1x8x8x8xf32> to vector<8x8x8xf32>
    %9 = vector.shape_cast %8 : vector<8x8x8xf32> to vector<64x8xf32>
    %10 = arith.truncf %9 : vector<64x8xf32> to vector<64x8xbf16>
    %c1 = arith.constant 1 : index
    %c0_9 = arith.constant 0 : index
    %c0_10 = arith.constant 0 : index
    %11 = vector.load %arg2[%c1, %c0_9, %c0_10] : memref<9x8x8xbf16, #tpu.memory_space<vmem>>, vector<1x8x8xbf16>
    %12 = vector.shape_cast %11 : vector<1x8x8xbf16> to vector<8x8xbf16>
    %cst_11 = arith.constant dense<0.000000e+00> : vector<64x8xf32>
    %13 = tpu.matmul %10, %12, %cst_11 {dimension_numbers = #tpu.dot_dimension_numbers<[1], [0], [0], [1], [0, 0, 1, 1], [], []>} : vector<64x8xbf16>, vector<8x8xbf16>, vector<64x8xf32> -> vector<64x8xf32>
    %14 = arith.addf %6, %13 : vector<64x8xf32>
    %c0_12 = arith.constant 0 : index
    %c0_13 = arith.constant 0 : index
    %c1_14 = arith.constant 1 : index
    %c0_15 = arith.constant 0 : index
    %15 = vector.load %arg1[%c0_12, %c0_13, %c1_14, %c0_15] : memref<1x36x9x8xf32, #tpu.memory_space<vmem>>, vector<1x8x8x8xf32>
    %16 = vector.shape_cast %15 : vector<1x8x8x8xf32> to vector<8x8x8xf32>
    %17 = vector.shape_cast %16 : vector<8x8x8xf32> to vector<64x8xf32>
    %18 = arith.truncf %17 : vector<64x8xf32> to vector<64x8xbf16>
    %c2 = arith.constant 2 : index
    %c0_16 = arith.constant 0 : index
    %c0_17 = arith.constant 0 : index
    %19 = vector.load %arg2[%c2, %c0_16, %c0_17] : memref<9x8x8xbf16, #tpu.memory_space<vmem>>, vector<1x8x8xbf16>
    %20 = vector.shape_cast %19 : vector<1x8x8xbf16> to vector<8x8xbf16>
    %cst_18 = arith.constant dense<0.000000e+00> : vector<64x8xf32>
    %21 = tpu.matmul %18, %20, %cst_18 {dimension_numbers = #tpu.dot_dimension_numbers<[1], [0], [0], [1], [0, 0, 1, 1], [], []>} : vector<64x8xbf16>, vector<8x8xbf16>, vector<64x8xf32> -> vector<64x8xf32>
    %22 = arith.addf %14, %21 : vector<64x8xf32>
    %c0_19 = arith.constant 0 : index
    %c18 = arith.constant 18 : index
    %c0_20 = arith.constant 0 : index
    %c0_21 = arith.constant 0 : index
    %23 = vector.load %arg1[%c0_19, %c18, %c0_20, %c0_21] : memref<1x36x9x8xf32, #tpu.memory_space<vmem>>, vector<1x8x8x8xf32>
    %24 = vector.shape_cast %23 : vector<1x8x8x8xf32> to vector<8x8x8xf32>
    %25 = vector.shape_cast %24 : vector<8x8x8xf32> to vector<64x8xf32>
    %26 = arith.truncf %25 : vector<64x8xf32> to vector<64x8xbf16>
    %c3 = arith.constant 3 : index
    %c0_22 = arith.constant 0 : index
    %c0_23 = arith.constant 0 : index
    %27 = vector.load %arg2[%c3, %c0_22, %c0_23] : memref<9x8x8xbf16, #tpu.memory_space<vmem>>, vector<1x8x8xbf16>
    %28 = vector.shape_cast %27 : vector<1x8x8xbf16> to vector<8x8xbf16>
    %cst_24 = arith.constant dense<0.000000e+00> : vector<64x8xf32>
    %29 = tpu.matmul %26, %28, %cst_24 {dimension_numbers = #tpu.dot_dimension_numbers<[1], [0], [0], [1], [0, 0, 1, 1], [], []>} : vector<64x8xbf16>, vector<8x8xbf16>, vector<64x8xf32> -> vector<64x8xf32>
    %30 = arith.addf %22, %29 : vector<64x8xf32>
    %c0_25 = arith.constant 0 : index
    %c27 = arith.constant 27 : index
    %c0_26 = arith.constant 0 : index
    %c0_27 = arith.constant 0 : index
    %31 = vector.load %arg1[%c0_25, %c27, %c0_26, %c0_27] : memref<1x36x9x8xf32, #tpu.memory_space<vmem>>, vector<1x8x8x8xf32>
    %32 = vector.shape_cast %31 : vector<1x8x8x8xf32> to vector<8x8x8xf32>
    %33 = vector.shape_cast %32 : vector<8x8x8xf32> to vector<64x8xf32>
    %34 = arith.truncf %33 : vector<64x8xf32> to vector<64x8xbf16>
    %c4 = arith.constant 4 : index
    %c0_28 = arith.constant 0 : index
    %c0_29 = arith.constant 0 : index
    %35 = vector.load %arg2[%c4, %c0_28, %c0_29] : memref<9x8x8xbf16, #tpu.memory_space<vmem>>, vector<1x8x8xbf16>
    %36 = vector.shape_cast %35 : vector<1x8x8xbf16> to vector<8x8xbf16>
    %cst_30 = arith.constant dense<0.000000e+00> : vector<64x8xf32>
    %37 = tpu.matmul %34, %36, %cst_30 {dimension_numbers = #tpu.dot_dimension_numbers<[1], [0], [0], [1], [0, 0, 1, 1], [], []>} : vector<64x8xbf16>, vector<8x8xbf16>, vector<64x8xf32> -> vector<64x8xf32>
    %38 = arith.addf %30, %37 : vector<64x8xf32>
    %c0_31 = arith.constant 0 : index
    %c18_32 = arith.constant 18 : index
    %c1_33 = arith.constant 1 : index
    %c0_34 = arith.constant 0 : index
    %39 = vector.load %arg1[%c0_31, %c18_32, %c1_33, %c0_34] : memref<1x36x9x8xf32, #tpu.memory_space<vmem>>, vector<1x8x8x8xf32>
    %40 = vector.shape_cast %39 : vector<1x8x8x8xf32> to vector<8x8x8xf32>
    %41 = vector.shape_cast %40 : vector<8x8x8xf32> to vector<64x8xf32>
    %42 = arith.truncf %41 : vector<64x8xf32> to vector<64x8xbf16>
    %c5 = arith.constant 5 : index
    %c0_35 = arith.constant 0 : index
    %c0_36 = arith.constant 0 : index
    %43 = vector.load %arg2[%c5, %c0_35, %c0_36] : memref<9x8x8xbf16, #tpu.memory_space<vmem>>, vector<1x8x8xbf16>
    %44 = vector.shape_cast %43 : vector<1x8x8xbf16> to vector<8x8xbf16>
    %cst_37 = arith.constant dense<0.000000e+00> : vector<64x8xf32>
    %45 = tpu.matmul %42, %44, %cst_37 {dimension_numbers = #tpu.dot_dimension_numbers<[1], [0], [0], [1], [0, 0, 1, 1], [], []>} : vector<64x8xbf16>, vector<8x8xbf16>, vector<64x8xf32> -> vector<64x8xf32>
    %46 = arith.addf %38, %45 : vector<64x8xf32>
    %c0_38 = arith.constant 0 : index
    %c1_39 = arith.constant 1 : index
    %c0_40 = arith.constant 0 : index
    %c0_41 = arith.constant 0 : index
    %47 = vector.load %arg1[%c0_38, %c1_39, %c0_40, %c0_41] : memref<1x36x9x8xf32, #tpu.memory_space<vmem>>, vector<1x8x8x8xf32>
    %48 = vector.shape_cast %47 : vector<1x8x8x8xf32> to vector<8x8x8xf32>
    %49 = vector.shape_cast %48 : vector<8x8x8xf32> to vector<64x8xf32>
    %50 = arith.truncf %49 : vector<64x8xf32> to vector<64x8xbf16>
    %c6 = arith.constant 6 : index
    %c0_42 = arith.constant 0 : index
    %c0_43 = arith.constant 0 : index
    %51 = vector.load %arg2[%c6, %c0_42, %c0_43] : memref<9x8x8xbf16, #tpu.memory_space<vmem>>, vector<1x8x8xbf16>
    %52 = vector.shape_cast %51 : vector<1x8x8xbf16> to vector<8x8xbf16>
    %cst_44 = arith.constant dense<0.000000e+00> : vector<64x8xf32>
    %53 = tpu.matmul %50, %52, %cst_44 {dimension_numbers = #tpu.dot_dimension_numbers<[1], [0], [0], [1], [0, 0, 1, 1], [], []>} : vector<64x8xbf16>, vector<8x8xbf16>, vector<64x8xf32> -> vector<64x8xf32>
    %54 = arith.addf %46, %53 : vector<64x8xf32>
    %c0_45 = arith.constant 0 : index
    %c10 = arith.constant 10 : index
    %c0_46 = arith.constant 0 : index
    %c0_47 = arith.constant 0 : index
    %55 = vector.load %arg1[%c0_45, %c10, %c0_46, %c0_47] : memref<1x36x9x8xf32, #tpu.memory_space<vmem>>, vector<1x8x8x8xf32>
    %56 = vector.shape_cast %55 : vector<1x8x8x8xf32> to vector<8x8x8xf32>
    %57 = vector.shape_cast %56 : vector<8x8x8xf32> to vector<64x8xf32>
    %58 = arith.truncf %57 : vector<64x8xf32> to vector<64x8xbf16>
    %c7 = arith.constant 7 : index
    %c0_48 = arith.constant 0 : index
    %c0_49 = arith.constant 0 : index
    %59 = vector.load %arg2[%c7, %c0_48, %c0_49] : memref<9x8x8xbf16, #tpu.memory_space<vmem>>, vector<1x8x8xbf16>
    %60 = vector.shape_cast %59 : vector<1x8x8xbf16> to vector<8x8xbf16>
    %cst_50 = arith.constant dense<0.000000e+00> : vector<64x8xf32>
    %61 = tpu.matmul %58, %60, %cst_50 {dimension_numbers = #tpu.dot_dimension_numbers<[1], [0], [0], [1], [0, 0, 1, 1], [], []>} : vector<64x8xbf16>, vector<8x8xbf16>, vector<64x8xf32> -> vector<64x8xf32>
    %62 = arith.addf %54, %61 : vector<64x8xf32>
    %c0_51 = arith.constant 0 : index
    %c1_52 = arith.constant 1 : index
    %c1_53 = arith.constant 1 : index
    %c0_54 = arith.constant 0 : index
    %63 = vector.load %arg1[%c0_51, %c1_52, %c1_53, %c0_54] : memref<1x36x9x8xf32, #tpu.memory_space<vmem>>, vector<1x8x8x8xf32>
    %64 = vector.shape_cast %63 : vector<1x8x8x8xf32> to vector<8x8x8xf32>
    %65 = vector.shape_cast %64 : vector<8x8x8xf32> to vector<64x8xf32>
    %66 = arith.truncf %65 : vector<64x8xf32> to vector<64x8xbf16>
    %c8 = arith.constant 8 : index
    %c0_55 = arith.constant 0 : index
    %c0_56 = arith.constant 0 : index
    %67 = vector.load %arg2[%c8, %c0_55, %c0_56] : memref<9x8x8xbf16, #tpu.memory_space<vmem>>, vector<1x8x8xbf16>
    %68 = vector.shape_cast %67 : vector<1x8x8xbf16> to vector<8x8xbf16>
    %cst_57 = arith.constant dense<0.000000e+00> : vector<64x8xf32>
    %69 = tpu.matmul %66, %68, %cst_57 {dimension_numbers = #tpu.dot_dimension_numbers<[1], [0], [0], [1], [0, 0, 1, 1], [], []>} : vector<64x8xbf16>, vector<8x8xbf16>, vector<64x8xf32> -> vector<64x8xf32>
    %70 = arith.addf %62, %69 : vector<64x8xf32>
    %c0_58 = arith.constant 0 : index
    %c0_59 = arith.constant 0 : index
    %71 = vector.load %arg3[%c0_58, %c0_59] : memref<1x8xf32, #tpu.memory_space<vmem>>, vector<1x8xf32>
    %72 = vector.broadcast %71 : vector<1x8xf32> to vector<64x8xf32>
    %73 = arith.addf %70, %72 : vector<64x8xf32>
    %cst_60 = arith.constant 0.000000e+00 : f32
    %74 = vector.broadcast %cst_60 : f32 to vector<64x8xf32>
    %75 = arith.maximumf %73, %74 : vector<64x8xf32>
    %76 = arith.truncf %75 : vector<64x8xf32> to vector<64x8xbf16>
    %c0_61 = arith.constant 0 : index
    %c0_62 = arith.constant 0 : index
    %c0_63 = arith.constant 0 : index
    %77 = vector.load %arg4[%c0_61, %c0_62, %c0_63] : memref<1x64x8xbf16, #tpu.memory_space<vmem>>, vector<1x64x8xbf16>
    %78 = vector.shape_cast %77 : vector<1x64x8xbf16> to vector<64x8xbf16>
    %79 = vector.shape_cast %76 : vector<64x8xbf16> to vector<1x64x8xbf16>
    tpu.vector_store %arg4[%c0_61, %c0_62, %c0_63], %79 {strides = array<i32>} : memref<1x64x8xbf16, #tpu.memory_space<vmem>>, vector<1x64x8xbf16>,
    return
  }
  func.func @transform_0(%arg0: i32) -> (i32, i32, i32, i32) {
    %c0_i32 = arith.constant 0 : i32
    %c0_i32_0 = arith.constant 0 : i32
    %c0_i32_1 = arith.constant 0 : i32
    %c0_i32_2 = arith.constant 0 : i32
    return %arg0, %c0_i32, %c0_i32_0, %c0_i32_1 : i32, i32, i32, i32
  }
  func.func @transform_1(%arg0: i32) -> (i32, i32, i32) {
    %c0_i32 = arith.constant 0 : i32
    %c0_i32_0 = arith.constant 0 : i32
    %c0_i32_1 = arith.constant 0 : i32
    %c0_i32_2 = arith.constant 0 : i32
    return %c0_i32, %c0_i32_0, %c0_i32_1 : i32, i32, i32
  }
  func.func @transform_2(%arg0: i32) -> (i32, i32) {
    %c0_i32 = arith.constant 0 : i32
    %c0_i32_0 = arith.constant 0 : i32
    %c0_i32_1 = arith.constant 0 : i32
    return %c0_i32, %c0_i32_0 : i32, i32
  }
  func.func @transform_3(%arg0: i32) -> (i32, i32, i32) {
    %c0_i32 = arith.constant 0 : i32
    %c0_i32_0 = arith.constant 0 : i32
    %c0_i32_1 = arith.constant 0 : i32
    return %arg0, %c0_i32, %c0_i32_0 : i32, i32, i32
  }
}

module attributes {stable_mosaic.version = 11 : i64} {
  func.func @_mm_bn_dual_kernel(%arg0: i32, %arg1: memref<64x8xbf16, #tpu.memory_space<vmem>>, %arg2: memref<8x16xbf16, #tpu.memory_space<vmem>>, %arg3: memref<1x16xf32, #tpu.memory_space<vmem>>, %arg4: memref<64x8xbf16, #tpu.memory_space<vmem>>, %arg5: memref<8x16xbf16, #tpu.memory_space<vmem>>, %arg6: memref<64x16xf32, #tpu.memory_space<vmem>>) attributes {dimension_semantics = [#tpu.dimension_semantics<parallel>], iteration_bounds = array<i64: 2>, scalar_prefetch = 0 : i64, scratch_operands = 0 : i64, tpu.core_type = #tpu.core_type<tc>, window_params = [{transform_indices = @transform_0, window_bounds = array<i64: 64, 8>}, {pipeline_mode = #tpu.pipeline_mode<synchronous>, transform_indices = @transform_1, window_bounds = array<i64: 8, 16>}, {pipeline_mode = #tpu.pipeline_mode<synchronous>, transform_indices = @transform_2, window_bounds = array<i64: 1, 16>}, {transform_indices = @transform_3, window_bounds = array<i64: 64, 8>}, {pipeline_mode = #tpu.pipeline_mode<synchronous>, transform_indices = @transform_4, window_bounds = array<i64: 8, 16>}, {transform_indices = @transform_5, window_bounds = array<i64: 64, 16>}]} {
    %c0 = arith.constant 0 : index
    %c0_0 = arith.constant 0 : index
    %0 = vector.load %arg1[%c0, %c0_0] : memref<64x8xbf16, #tpu.memory_space<vmem>>, vector<64x8xbf16>
    %c0_1 = arith.constant 0 : index
    %c0_2 = arith.constant 0 : index
    %1 = vector.load %arg2[%c0_1, %c0_2] : memref<8x16xbf16, #tpu.memory_space<vmem>>, vector<8x16xbf16>
    %cst = arith.constant dense<0.000000e+00> : vector<64x16xf32>
    %2 = tpu.matmul %0, %1, %cst {dimension_numbers = #tpu.dot_dimension_numbers<[1], [0], [0], [1], [0, 0, 1, 1], [], []>} : vector<64x8xbf16>, vector<8x16xbf16>, vector<64x16xf32> -> vector<64x16xf32>
    %c0_3 = arith.constant 0 : index
    %c0_4 = arith.constant 0 : index
    %3 = vector.load %arg4[%c0_3, %c0_4] : memref<64x8xbf16, #tpu.memory_space<vmem>>, vector<64x8xbf16>
    %c0_5 = arith.constant 0 : index
    %c0_6 = arith.constant 0 : index
    %4 = vector.load %arg5[%c0_5, %c0_6] : memref<8x16xbf16, #tpu.memory_space<vmem>>, vector<8x16xbf16>
    %cst_7 = arith.constant dense<0.000000e+00> : vector<64x16xf32>
    %5 = tpu.matmul %3, %4, %cst_7 {dimension_numbers = #tpu.dot_dimension_numbers<[1], [0], [0], [1], [0, 0, 1, 1], [], []>} : vector<64x8xbf16>, vector<8x16xbf16>, vector<64x16xf32> -> vector<64x16xf32>
    %6 = arith.addf %2, %5 : vector<64x16xf32>
    %c0_8 = arith.constant 0 : index
    %c0_9 = arith.constant 0 : index
    %7 = vector.load %arg3[%c0_8, %c0_9] : memref<1x16xf32, #tpu.memory_space<vmem>>, vector<1x16xf32>
    %8 = vector.broadcast %7 : vector<1x16xf32> to vector<64x16xf32>
    %9 = arith.addf %6, %8 : vector<64x16xf32>
    %cst_10 = arith.constant 0.000000e+00 : f32
    %10 = vector.broadcast %cst_10 : f32 to vector<64x16xf32>
    %11 = arith.maximumf %9, %10 : vector<64x16xf32>
    %c0_11 = arith.constant 0 : index
    %c0_12 = arith.constant 0 : index
    %12 = vector.load %arg6[%c0_11, %c0_12] : memref<64x16xf32, #tpu.memory_space<vmem>>, vector<64x16xf32>
    tpu.vector_store %arg6[%c0_11, %c0_12], %11 {strides = array<i32>} : memref<64x16xf32, #tpu.memory_space<vmem>>, vector<64x16xf32>,
    return
  }
  func.func @transform_0(%arg0: i32) -> (i32, i32) {
    %c0_i32 = arith.constant 0 : i32
    %c0_i32_0 = arith.constant 0 : i32
    return %arg0, %c0_i32 : i32, i32
  }
  func.func @transform_1(%arg0: i32) -> (i32, i32) {
    %c0_i32 = arith.constant 0 : i32
    %c0_i32_0 = arith.constant 0 : i32
    %c0_i32_1 = arith.constant 0 : i32
    return %c0_i32, %c0_i32_0 : i32, i32
  }
  func.func @transform_2(%arg0: i32) -> (i32, i32) {
    %c0_i32 = arith.constant 0 : i32
    %c0_i32_0 = arith.constant 0 : i32
    %c0_i32_1 = arith.constant 0 : i32
    return %c0_i32, %c0_i32_0 : i32, i32
  }
  func.func @transform_3(%arg0: i32) -> (i32, i32) {
    %c0_i32 = arith.constant 0 : i32
    %c0_i32_0 = arith.constant 0 : i32
    return %arg0, %c0_i32 : i32, i32
  }
  func.func @transform_4(%arg0: i32) -> (i32, i32) {
    %c0_i32 = arith.constant 0 : i32
    %c0_i32_0 = arith.constant 0 : i32
    %c0_i32_1 = arith.constant 0 : i32
    return %c0_i32, %c0_i32_0 : i32, i32
  }
  func.func @transform_5(%arg0: i32) -> (i32, i32) {
    %c0_i32 = arith.constant 0 : i32
    %c0_i32_0 = arith.constant 0 : i32
    return %arg0, %c0_i32 : i32, i32
  }
}

</mosaic_0001>

<llo_original>
// kernel: bottleneck_forward.3
$region0: #{bottleneck_forward.3}
  #allocation0 [shape = 'u32[]', space=smem, size = 0x4, offset = 0x4, fixed_abs, tag = 'smem constant byte address 0x4 - core index']
  #allocation1 [shape = 'u32[144,128]{1,0:T(1,128)}', space=vmem, size = 0x12000, scoped, tag = 'internal scratch']
  %s0 = inlined_call_operand.vmem [shape: bf16[512,8], index: 0, kind: input, shape index: {}]
  %s1 = inlined_call_operand.vmem [shape: bf16[8,8], index: 1, kind: input, shape index: {}]
  %s2 = inlined_call_operand.vmem [shape: f32[1,8], index: 2, kind: input, shape index: {}]
  %s3 = inlined_call_operand.vmem [shape: bf16[512,8], index: 3, kind: output, shape index: {}]
  %s4 = sld [smem:[#allocation0]]
  $region45: #{bottleneck_forward.3} parent=0
    _
  %s6 = ssub.s32 1, %s4
  %s7 = scalar_select 0, %s6, %s4
  loop: start=0, step=1, limit=4
  $region2: #{bottleneck_forward.3} parent=0 // loop_pre_header
    _
  $region3: #{bottleneck_forward.3} parent=0 // loop_header
    %s9 = sphi 0, %s13
    %p10 = scmp.ge.s32.totalorder %s9, 4
    %s19 = sphi 0, %s21
    %s22 = sphi 0, %s19
    %s23 = sphi 0, %s22
    %s39 = sphi 0, %s23
    %s43 = sphi 0, %s43
    %s45 = sphi 0, %s43
    %s46 = sphi 0, %s45
    %s60 = sphi 0, %s46
    %s64 = sphi 0, %s64
    %s66 = sphi 0, %s64
    %s67 = sphi 0, %s66
    %s81 = sphi 0, %s67
    %s87 = sphi 0, %s89
    %s90 = sphi 0, %s87
    %s91 = sphi 0, %s90
    %s107 = sphi 0, %s91
  $region4: #{bottleneck_forward.3} parent=0 // loop_header_branch
    %12 = sbr.rel (%p10) target = $region8
  $region5: #{bottleneck_forward.3} parent=0 // loop_body
    %s14 = ssub.s32 %s9, 1
    %s15 = ssub.s32 %s9, 2
    %s16 = sadd.s32 %s9, 1
    %s17 = ssub.s32 %s9, %s16
    %p18 = scmp.eq.s32.totalorder %s17, 0
    %s20 = sadd.s32 %s19, 1
    %s21 = scalar_select %p18, %s19, %s20
    %p24 = pneg %p18
    %p25 = scmp.eq.s32.totalorder %s9, 1
    %p26 = por %p24, %p25
    %p27 = scmp.ne.s32.totalorder %s19, %s22
    %p28 = scmp.eq.s32.totalorder %s9, 0
    %p29 = por %p27, %p28
    %p30 = scmp.ne.s32.totalorder %s19, %s22
    %p31 = scmp.eq.s32.totalorder %s14, 1
    %p32 = por %p30, %p31
    %p33 = scmp.ne.s32.totalorder %s22, %s23
    %p34 = scmp.eq.s32.totalorder %s14, 0
    %p35 = por %p33, %p34
    %p36 = scmp.ne.s32.totalorder %s22, %s23
    %p37 = scmp.eq.s32.totalorder %s15, 1
    %p38 = por %p36, %p37
    %p40 = scmp.ne.s32.totalorder %s23, %s39
    %p41 = scmp.eq.s32.totalorder %s15, 0
    %p42 = por %p40, %p41
    %s44 = sadd.s32 %s43, 1
    %p47 = scmp.eq.s32.totalorder %s9, 1
    %p48 = scmp.ne.s32.totalorder %s43, %s45
    %p49 = scmp.eq.s32.totalorder %s9, 0
    %p50 = por %p48, %p49
    %p51 = scmp.ne.s32.totalorder %s43, %s45
    %p52 = scmp.eq.s32.totalorder %s14, 1
    %p53 = por %p51, %p52
    %p54 = scmp.ne.s32.totalorder %s45, %s46
    %p55 = scmp.eq.s32.totalorder %s14, 0
    %p56 = por %p54, %p55
    %p57 = scmp.ne.s32.totalorder %s45, %s46
    %p58 = scmp.eq.s32.totalorder %s15, 1
    %p59 = por %p57, %p58
    %p61 = scmp.ne.s32.totalorder %s46, %s60
    %p62 = scmp.eq.s32.totalorder %s15, 0
    %p63 = por %p61, %p62
    %s65 = sadd.s32 %s64, 1
    %p68 = scmp.eq.s32.totalorder %s9, 1
    %p69 = scmp.ne.s32.totalorder %s64, %s66
    %p70 = scmp.eq.s32.totalorder %s9, 0
    %p71 = por %p69, %p70
    %p72 = scmp.ne.s32.totalorder %s64, %s66
    %p73 = scmp.eq.s32.totalorder %s14, 1
    %p74 = por %p72, %p73
    %p75 = scmp.ne.s32.totalorder %s66, %s67
    %p76 = scmp.eq.s32.totalorder %s14, 0
    %p77 = por %p75, %p76
    %p78 = scmp.ne.s32.totalorder %s66, %s67
    %p79 = scmp.eq.s32.totalorder %s15, 1
    %p80 = por %p78, %p79
    %p82 = scmp.ne.s32.totalorder %s67, %s81
    %p83 = scmp.eq.s32.totalorder %s15, 0
    %p84 = por %p82, %p83
    %s85 = ssub.s32 %s9, %s16
    %p86 = scmp.eq.s32.totalorder %s85, 0
    %s88 = sadd.s32 %s87, 1
    %s89 = scalar_select %p86, %s87, %s88
    %p92 = pneg %p86
    %p93 = scmp.eq.s32.totalorder %s9, 1
    %p94 = por %p92, %p93
    %p95 = scmp.ne.s32.totalorder %s87, %s90
    %p96 = scmp.eq.s32.totalorder %s9, 0
    %p97 = por %p95, %p96
    %p98 = scmp.ne.s32.totalorder %s87, %s90
    %p99 = scmp.eq.s32.totalorder %s14, 1
    %p100 = por %p98, %p99
    %p101 = scmp.ne.s32.totalorder %s90, %s91
    %p102 = scmp.eq.s32.totalorder %s14, 0
    %p103 = por %p101, %p102
    %p104 = scmp.ne.s32.totalorder %s90, %s91
    %p105 = scmp.eq.s32.totalorder %s15, 1
    %p106 = por %p104, %p105
    %p108 = scmp.ne.s32.totalorder %s91, %s107
    %p109 = scmp.eq.s32.totalorder %s15, 0
    %p110 = por %p108, %p109
    %p111 = scmp.le.s32.totalorder 1, %s9
    %p112 = scmp.lt.s32.totalorder %s9, 3
    %p113 = pnand %p111, %p112
    %p114 = pneg %p113
    // Predicated region
    $region9: #{bottleneck_forward.3} parent=5 // pred_check
      _
    $region10: #{bottleneck_forward.3} parent=5 // pred_check_branch
      %116 = sbr.rel (%p113) target = $region12
    $region11: #{bottleneck_forward.3} parent=5 // pred_region
      %s117 = ssub.s32 %s9, 1
      // Predicated region
      $region13: #{bottleneck_forward.3} parent=11 // pred_check
        %p118 = pneg %p56
      $region14: #{bottleneck_forward.3} parent=11 // pred_check_branch
        %120 = sbr.rel (%p118) target = $region16
      $region15: #{bottleneck_forward.3} parent=11 // pred_region
        _
      $region16: #{bottleneck_forward.3} parent=11 // pred_fallthru
        _
      // Predicated region
      $region17: #{bottleneck_forward.3} parent=11 // pred_check
        %p121 = pneg %p77
      $region18: #{bottleneck_forward.3} parent=11 // pred_check_branch
        %123 = sbr.rel (%p121) target = $region20
      $region19: #{bottleneck_forward.3} parent=11 // pred_region
        _
      $region20: #{bottleneck_forward.3} parent=11 // pred_fallthru
        _
    $region12: #{bottleneck_forward.3} parent=5 // pred_fallthru
      _
    %p124 = scmp.lt.s32.totalorder %s9, 2
    // Predicated region
    $region21: #{bottleneck_forward.3} parent=5 // pred_check
      %p125 = pneg %p124
    $region22: #{bottleneck_forward.3} parent=5 // pred_check_branch
      %127 = sbr.rel (%p125) target = $region24
    $region23: #{bottleneck_forward.3} parent=5 // pred_region
      // Predicated region
      $region25: #{bottleneck_forward.3} parent=23 // pred_check
        %p128 = pneg %p29
      $region26: #{bottleneck_forward.3} parent=23 // pred_check_branch
        %130 = sbr.rel (%p128) target = $region28
      $region27: #{bottleneck_forward.3} parent=23 // pred_region
        %s131 = smul.u32 32, %s9
        %p132 = scmp.lt.s32.totalorder %s131, 63
        %s133 = scalar_select %p132, %s131, 63
        %s134 = smul.addr %s133, 4
        %s135 = scalar_lea.vmem %s0, %s134
        %s136 = smul.u32 32, %s9
      $region28: #{bottleneck_forward.3} parent=23 // pred_fallthru
        _
    $region24: #{bottleneck_forward.3} parent=5 // pred_fallthru
      _
    %p137 = scmp.le.s32.totalorder 1, %s9
    %p138 = scmp.lt.s32.totalorder %s9, 3
    %p139 = pnand %p137, %p138
    %p140 = pneg %p139
    // Predicated region
    $region29: #{bottleneck_forward.3} parent=5 // pred_check
      _
    $region30: #{bottleneck_forward.3} parent=5 // pred_check_branch
      %142 = sbr.rel (%p139) target = $region32
    $region31: #{bottleneck_forward.3} parent=5 // pred_region
      %s143 = ssub.s32 %s9, 1
      %s144 = smul.u32 32, %s14
      %p145 = scmp.lt.s32.totalorder %s144, 63
      %s146 = scalar_select %p145, %s144, 63
      %s147 = smul.addr %s146, 4
      %s148 = scalar_lea.vmem %s0, %s147
      %p149 = pneg %p35
      %p150 = pneg %p32
      %p151 = pneg %p56
      %p152 = pneg %p53
      %p153 = pneg %p77
      %p154 = pneg %p74
      %p155 = pneg %p103
      %p156 = pneg %p100
      %s157 = smul.u32 32, %s14
      %p158 = scmp.lt.s32.totalorder %s157, 63
      %s159 = scalar_select %p158, %s157, 63
      %s160 = smul.addr %s159, 4
      %s161 = scalar_lea.vmem %s3, %s160
      %s162 = smul.u32 32, %s14
      %p163 = scmp.lt.s32.totalorder %s162, 63
      %s164 = scalar_select %p163, %s162, 63
      %s165 = smul.addr %s164, 4
      %s166 = scalar_lea.vmem %s0, %s165
      %s167 = smul.u32 32, %s14
      %s168 = smul.u32 32, %s14
      %p169 = scmp.lt.s32.totalorder %s168, 63
      %s170 = scalar_select %p169, %s168, 63
      %s171 = smul.addr %s170, 4
      %s172 = scalar_lea.vmem %s3, %s171
      %s173 = smul.u32 32, %s14
      %v175 = vld [vmem:[%s166] sm:$0xf]
      %v176 = vld [vmem:[%s166 + $0x4] sm:$0xf]
      %v177 = vld [vmem:[%s166 + $0x8] sm:$0xf]
      %v178 = vld [vmem:[%s166 + $0xc] sm:$0xf]
      %v179 = vld [vmem:[%s166 + $0x10] sm:$0xf]
      %v180 = vld [vmem:[%s166 + $0x14] sm:$0xf]
      %v181 = vld [vmem:[%s166 + $0x18] sm:$0xf]
      %v182 = vld [vmem:[%s166 + $0x1c] sm:$0xf]
      %v183 = vld [vmem:[%s166 + $0x20] sm:$0xf]
      %v184 = vld [vmem:[%s166 + $0x24] sm:$0xf]
      %v185 = vld [vmem:[%s166 + $0x28] sm:$0xf]
      %v186 = vld [vmem:[%s166 + $0x2c] sm:$0xf]
      %v187 = vld [vmem:[%s166 + $0x30] sm:$0xf]
      %v188 = vld [vmem:[%s166 + $0x34] sm:$0xf]
      %v189 = vld [vmem:[%s166 + $0x38] sm:$0xf]
      %v190 = vld [vmem:[%s166 + $0x3c] sm:$0xf]
      %v191 = vld [vmem:[%s166 + $0x40] sm:$0xf]
      %v192 = vld [vmem:[%s166 + $0x44] sm:$0xf]
      %v193 = vld [vmem:[%s166 + $0x48] sm:$0xf]
      %v194 = vld [vmem:[%s166 + $0x4c] sm:$0xf]
      %v195 = vld [vmem:[%s166 + $0x50] sm:$0xf]
      %v196 = vld [vmem:[%s166 + $0x54] sm:$0xf]
      %v197 = vld [vmem:[%s166 + $0x58] sm:$0xf]
      %v198 = vld [vmem:[%s166 + $0x5c] sm:$0xf]
      %v199 = vld [vmem:[%s166 + $0x60] sm:$0xf]
      %v200 = vld [vmem:[%s166 + $0x64] sm:$0xf]
      %v201 = vld [vmem:[%s166 + $0x68] sm:$0xf]
      %v202 = vld [vmem:[%s166 + $0x6c] sm:$0xf]
      %v203 = vld [vmem:[%s166 + $0x70] sm:$0xf]
      %v204 = vld [vmem:[%s166 + $0x74] sm:$0xf]
      %v205 = vld [vmem:[%s166 + $0x78] sm:$0xf]
      %v206 = vld [vmem:[%s166 + $0x7c] sm:$0xf]
      %v207 = vld [vmem:[%s1] sm:$0xf]
      %v208 = vld [vmem:[%s2] sm:$0x1]
      %v210 = vlaneseq
      %v211 = vshrl.u32 %v210, 7
      %v212 = vsub.s32 0, %v211
      %v213 = vrot.slane %v208, %v212
      %v247 = vunpack.c.l.b16 %v175
      %v248 = vunpack.c.l.b16 %v176
      %v249 = vunpack.c.l.b16 %v177
      %v250 = vunpack.c.l.b16 %v178
      %v251 = vunpack.c.l.b16 %v179
      %v252 = vunpack.c.l.b16 %v180
      %v253 = vunpack.c.l.b16 %v181
      %v254 = vunpack.c.l.b16 %v182
      %v255 = vunpack.c.l.b16 %v183
      %v256 = vunpack.c.l.b16 %v184
      %v257 = vunpack.c.l.b16 %v185
      %v258 = vunpack.c.l.b16 %v186
      %v259 = vunpack.c.l.b16 %v187
      %v260 = vunpack.c.l.b16 %v188
      %v261 = vunpack.c.l.b16 %v189
      %v262 = vunpack.c.l.b16 %v190
      %v263 = vunpack.c.l.b16 %v191
      %v264 = vunpack.c.l.b16 %v192
      %v265 = vunpack.c.l.b16 %v193
      %v266 = vunpack.c.l.b16 %v194
      %v267 = vunpack.c.l.b16 %v195
      %v268 = vunpack.c.l.b16 %v196
      %v269 = vunpack.c.l.b16 %v197
      %v270 = vunpack.c.l.b16 %v198
      %v271 = vunpack.c.l.b16 %v199
      %v272 = vunpack.c.l.b16 %v200
      %v273 = vunpack.c.l.b16 %v201
      %v274 = vunpack.c.l.b16 %v202
      %v275 = vunpack.c.l.b16 %v203
      %v276 = vunpack.c.l.b16 %v204
      %v277 = vunpack.c.l.b16 %v205
      %v278 = vunpack.c.l.b16 %v206
      %v279 = vpack.c.b16 %v248, %v247
      %v280 = vpack.c.b16 %v250, %v249
      %v281 = vpack.c.b16 %v252, %v251
      %v282 = vpack.c.b16 %v254, %v253
      %v283 = vpack.c.b16 %v256, %v255
      %v284 = vpack.c.b16 %v258, %v257
      %v285 = vpack.c.b16 %v260, %v259
      %v286 = vpack.c.b16 %v262, %v261
      %v287 = vpack.c.b16 %v264, %v263
      %v288 = vpack.c.b16 %v266, %v265
      %v289 = vpack.c.b16 %v268, %v267
      %v290 = vpack.c.b16 %v270, %v269
      %v291 = vpack.c.b16 %v272, %v271
      %v292 = vpack.c.b16 %v274, %v273
      %v293 = vpack.c.b16 %v276, %v275
      %v294 = vpack.c.b16 %v278, %v277
      %vm295 = vcmask 64512
      %v297 = vsel %vm295, %v279, 0
      %v300 = vsel %vm295, %v280, 0
      %v303 = vsel %vm295, %v281, 0
      %v306 = vsel %vm295, %v282, 0
      %v309 = vsel %vm295, %v283, 0
      %v312 = vsel %vm295, %v284, 0
      %v315 = vsel %vm295, %v285, 0
      %v318 = vsel %vm295, %v286, 0
      %v321 = vsel %vm295, %v287, 0
      %v324 = vsel %vm295, %v288, 0
      %v327 = vsel %vm295, %v289, 0
      %v330 = vsel %vm295, %v290, 0
      %v333 = vsel %vm295, %v291, 0
      %v336 = vsel %vm295, %v292, 0
      %v339 = vsel %vm295, %v293, 0
      %v342 = vsel %vm295, %v294, 0
      %vm344 = vcmask 1043456
      %v346 = vsel %vm344, %v207, 0
      %348 = vmatprep.subr.bf16.mxu0 0
      %349 = vmatpush1.bf16.msra.mxu0 0
      %350 = vmatprep.subr.bf16.mxu0 0
      %351 = vmatpush1.bf16.msra.mxu0 0
      %352 = vmatprep.subr.bf16.mxu0 0
      %353 = vmatpush1.bf16.msra.mxu0 0
      %354 = vmatprep.subr.bf16.mxu0 0
      %355 = vmatpush1.bf16.msra.mxu0 0
      %356 = vmatprep.subr.bf16.mxu0 0
      %357 = vmatpush1.bf16.msra.mxu0 0
      %358 = vmatprep.subr.bf16.mxu0 0
      %359 = vmatpush1.bf16.msra.mxu0 0
      %360 = vmatprep.subr.bf16.mxu0 0
      %361 = vmatpush1.bf16.msra.mxu0 0
      %362 = vmatprep.subr.bf16.mxu0 0
      %363 = vmatpush1.bf16.msra.mxu0 %v346
      %364 = vmatprep.subr.bf16.mxu0 0
      %365 = vmatpush2.bf16.msra.mxu0 0
      %366 = vmatprep.subr.bf16.mxu0 0
      %367 = vmatpush2.bf16.msra.mxu0 0
      %368 = vmatprep.subr.bf16.mxu0 0
      %369 = vmatpush2.bf16.msra.mxu0 0
      %370 = vmatprep.subr.bf16.mxu0 0
      %371 = vmatpush2.bf16.msra.mxu0 0
      %372 = vmatprep.subr.bf16.mxu0 0
      %373 = vmatpush2.bf16.msra.mxu0 0
      %374 = vmatprep.subr.bf16.mxu0 0
      %375 = vmatpush2.bf16.msra.mxu0 0
      %376 = vmatprep.subr.bf16.mxu0 0
      %377 = vmatpush2.bf16.msra.mxu0 0
      %378 = vmatprep.subr.bf16.mxu0 0
      %379 = vmatpush2.bf16.msra.mxu0 0
      %380 = vmatprep.mubr.bf16.mxu0 0
      %381 = vmatmul.mubr.bf16.gmra.mxu0 %v297
      %v382 = vpop.f32.mrf.mxu0
      %v383 = vadd.f32 %v213, %v382
      %v384 = vpop.f32.mrf.mxu0
      %v385 = vpop.f32.mrf.mxu0
      %v386 = vadd.f32 %v213, %v385
      %v387 = vpop.f32.mrf.mxu0
      %388 = vmatprep.mubr.bf16.mxu0 0
      %389 = vmatmul.mubr.bf16.gmra.mxu0 %v300
      %v390 = vpop.f32.mrf.mxu0
      %v391 = vadd.f32 %v213, %v390
      %v392 = vpop.f32.mrf.mxu0
      %v393 = vpop.f32.mrf.mxu0
      %v394 = vadd.f32 %v213, %v393
      %v395 = vpop.f32.mrf.mxu0
      %396 = vmatprep.mubr.bf16.mxu0 0
      %397 = vmatmul.mubr.bf16.gmra.mxu0 %v303
      %v398 = vpop.f32.mrf.mxu0
      %v399 = vadd.f32 %v213, %v398
      %v400 = vpop.f32.mrf.mxu0
      %v401 = vpop.f32.mrf.mxu0
      %v402 = vadd.f32 %v213, %v401
      %v403 = vpop.f32.mrf.mxu0
      %404 = vmatprep.mubr.bf16.mxu0 0
      %405 = vmatmul.mubr.bf16.gmra.mxu0 %v306
      %v406 = vpop.f32.mrf.mxu0
      %v407 = vadd.f32 %v213, %v406
      %v408 = vpop.f32.mrf.mxu0
      %v409 = vpop.f32.mrf.mxu0
      %v410 = vadd.f32 %v213, %v409
      %v411 = vpop.f32.mrf.mxu0
      %412 = vmatprep.mubr.bf16.mxu0 0
      %413 = vmatmul.mubr.bf16.gmra.mxu0 %v309
      %v414 = vpop.f32.mrf.mxu0
      %v415 = vadd.f32 %v213, %v414
      %v416 = vpop.f32.mrf.mxu0
      %v417 = vpop.f32.mrf.mxu0
      %v418 = vadd.f32 %v213, %v417
      %v419 = vpop.f32.mrf.mxu0
      %420 = vmatprep.mubr.bf16.mxu0 0
      %421 = vmatmul.mubr.bf16.gmra.mxu0 %v312
      %v422 = vpop.f32.mrf.mxu0
      %v423 = vadd.f32 %v213, %v422
      %v424 = vpop.f32.mrf.mxu0
      %v425 = vpop.f32.mrf.mxu0
      %v426 = vadd.f32 %v213, %v425
      %v427 = vpop.f32.mrf.mxu0
      %428 = vmatprep.mubr.bf16.mxu0 0
      %429 = vmatmul.mubr.bf16.gmra.mxu0 %v315
      %v430 = vpop.f32.mrf.mxu0
      %v431 = vadd.f32 %v213, %v430
      %v432 = vpop.f32.mrf.mxu0
      %v433 = vpop.f32.mrf.mxu0
      %v434 = vadd.f32 %v213, %v433
      %v435 = vpop.f32.mrf.mxu0
      %436 = vmatprep.mubr.bf16.mxu0 0
      %437 = vmatmul.mubr.bf16.gmra.mxu0 %v318
      %v438 = vpop.f32.mrf.mxu0
      %v439 = vadd.f32 %v213, %v438
      %v440 = vpop.f32.mrf.mxu0
      %v441 = vpop.f32.mrf.mxu0
      %v442 = vadd.f32 %v213, %v441
      %v443 = vpop.f32.mrf.mxu0
      %444 = vmatprep.mubr.bf16.mxu0 0
      %445 = vmatmul.mubr.bf16.gmra.mxu0 %v321
      %v446 = vpop.f32.mrf.mxu0
      %v447 = vadd.f32 %v213, %v446
      %v448 = vpop.f32.mrf.mxu0
      %v449 = vpop.f32.mrf.mxu0
      %v450 = vadd.f32 %v213, %v449
      %v451 = vpop.f32.mrf.mxu0
      %452 = vmatprep.mubr.bf16.mxu0 0
      %453 = vmatmul.mubr.bf16.gmra.mxu0 %v324
      %v454 = vpop.f32.mrf.mxu0
      %v455 = vadd.f32 %v213, %v454
      %v456 = vpop.f32.mrf.mxu0
      %v457 = vpop.f32.mrf.mxu0
      %v458 = vadd.f32 %v213, %v457
      %v459 = vpop.f32.mrf.mxu0
      %460 = vmatprep.mubr.bf16.mxu0 0
      %461 = vmatmul.mubr.bf16.gmra.mxu0 %v327
      %v462 = vpop.f32.mrf.mxu0
      %v463 = vadd.f32 %v213, %v462
      %v464 = vpop.f32.mrf.mxu0
      %v465 = vpop.f32.mrf.mxu0
      %v466 = vadd.f32 %v213, %v465
      %v467 = vpop.f32.mrf.mxu0
      %468 = vmatprep.mubr.bf16.mxu0 0
      %469 = vmatmul.mubr.bf16.gmra.mxu0 %v330
      %v470 = vpop.f32.mrf.mxu0
      %v471 = vadd.f32 %v213, %v470
      %v472 = vpop.f32.mrf.mxu0
      %v473 = vpop.f32.mrf.mxu0
      %v474 = vadd.f32 %v213, %v473
      %v475 = vpop.f32.mrf.mxu0
      %476 = vmatprep.mubr.bf16.mxu0 0
      %477 = vmatmul.mubr.bf16.gmra.mxu0 %v333
      %v478 = vpop.f32.mrf.mxu0
      %v479 = vadd.f32 %v213, %v478
      %v480 = vpop.f32.mrf.mxu0
      %v481 = vpop.f32.mrf.mxu0
      %v482 = vadd.f32 %v213, %v481
      %v483 = vpop.f32.mrf.mxu0
      %484 = vmatprep.mubr.bf16.mxu0 0
      %485 = vmatmul.mubr.bf16.gmra.mxu0 %v336
      %v486 = vpop.f32.mrf.mxu0
      %v487 = vadd.f32 %v213, %v486
      %v488 = vpop.f32.mrf.mxu0
      %v489 = vpop.f32.mrf.mxu0
      %v490 = vadd.f32 %v213, %v489
      %v491 = vpop.f32.mrf.mxu0
      %492 = vmatprep.mubr.bf16.mxu0 0
      %493 = vmatmul.mubr.bf16.gmra.mxu0 %v339
      %v494 = vpop.f32.mrf.mxu0
      %v495 = vadd.f32 %v213, %v494
      %v496 = vpop.f32.mrf.mxu0
      %v497 = vpop.f32.mrf.mxu0
      %v498 = vadd.f32 %v213, %v497
      %v499 = vpop.f32.mrf.mxu0
      %500 = vmatprep.mubr.bf16.mxu0 0
      %501 = vmatmul.mubr.bf16.gmra.mxu0 %v342
      %v502 = vpop.f32.mrf.mxu0
      %v503 = vadd.f32 %v213, %v502
      %v504 = vpop.f32.mrf.mxu0
      %v505 = vpop.f32.mrf.mxu0
      %v506 = vadd.f32 %v213, %v505
      %v507 = vpop.f32.mrf.mxu0
      %508 = vdwg.mxu0
      %v509 = vmax.f32 %v383, 0.0
      %v510 = vmax.f32 %v386, 0.0
      %v511 = vmax.f32 %v391, 0.0
      %v512 = vmax.f32 %v394, 0.0
      %v513 = vmax.f32 %v399, 0.0
      %v514 = vmax.f32 %v402, 0.0
      %v515 = vmax.f32 %v407, 0.0
      %v516 = vmax.f32 %v410, 0.0
      %v517 = vmax.f32 %v415, 0.0
      %v518 = vmax.f32 %v418, 0.0
      %v519 = vmax.f32 %v423, 0.0
      %v520 = vmax.f32 %v426, 0.0
      %v521 = vmax.f32 %v431, 0.0
      %v522 = vmax.f32 %v434, 0.0
      %v523 = vmax.f32 %v439, 0.0
      %v524 = vmax.f32 %v442, 0.0
      %v525 = vmax.f32 %v447, 0.0
      %v526 = vmax.f32 %v450, 0.0
      %v527 = vmax.f32 %v455, 0.0
      %v528 = vmax.f32 %v458, 0.0
      %v529 = vmax.f32 %v463, 0.0
      %v530 = vmax.f32 %v466, 0.0
      %v531 = vmax.f32 %v471, 0.0
      %v532 = vmax.f32 %v474, 0.0
      %v533 = vmax.f32 %v479, 0.0
      %v534 = vmax.f32 %v482, 0.0
      %v535 = vmax.f32 %v487, 0.0
      %v536 = vmax.f32 %v490, 0.0
      %v537 = vmax.f32 %v495, 0.0
      %v538 = vmax.f32 %v498, 0.0
      %v539 = vmax.f32 %v503, 0.0
      %v540 = vmax.f32 %v506, 0.0
      %v541 = vpack.c.bf16 %v510, %v509
      %v542 = vpack.c.bf16 %v512, %v511
      %v543 = vpack.c.bf16 %v514, %v513
      %v544 = vpack.c.bf16 %v516, %v515
      %v545 = vpack.c.bf16 %v518, %v517
      %v546 = vpack.c.bf16 %v520, %v519
      %v547 = vpack.c.bf16 %v522, %v521
      %v548 = vpack.c.bf16 %v524, %v523
      %v549 = vpack.c.bf16 %v526, %v525
      %v550 = vpack.c.bf16 %v528, %v527
      %v551 = vpack.c.bf16 %v530, %v529
      %v552 = vpack.c.bf16 %v532, %v531
      %v553 = vpack.c.bf16 %v534, %v533
      %v554 = vpack.c.bf16 %v536, %v535
      %v555 = vpack.c.bf16 %v538, %v537
      %v556 = vpack.c.bf16 %v540, %v539
      %v573 = vunpack.c.l.b16 %v541
      %v574 = vunpack.c.h.b16 %v541
      %v575 = vunpack.c.l.b16 %v542
      %v576 = vunpack.c.h.b16 %v542
      %v577 = vunpack.c.l.b16 %v543
      %v578 = vunpack.c.h.b16 %v543
      %v579 = vunpack.c.l.b16 %v544
      %v580 = vunpack.c.h.b16 %v544
      %v581 = vunpack.c.l.b16 %v545
      %v582 = vunpack.c.h.b16 %v545
      %v583 = vunpack.c.l.b16 %v546
      %v584 = vunpack.c.h.b16 %v546
      %v585 = vunpack.c.l.b16 %v547
      %v586 = vunpack.c.h.b16 %v547
      %v587 = vunpack.c.l.b16 %v548
      %v588 = vunpack.c.h.b16 %v548
      %v589 = vunpack.c.l.b16 %v549
      %v590 = vunpack.c.h.b16 %v549
      %v591 = vunpack.c.l.b16 %v550
      %v592 = vunpack.c.h.b16 %v550
      %v593 = vunpack.c.l.b16 %v551
      %v594 = vunpack.c.h.b16 %v551
      %v595 = vunpack.c.l.b16 %v552
      %v596 = vunpack.c.h.b16 %v552
      %v597 = vunpack.c.l.b16 %v553
      %v598 = vunpack.c.h.b16 %v553
      %v599 = vunpack.c.l.b16 %v554
      %v600 = vunpack.c.h.b16 %v554
      %v601 = vunpack.c.l.b16 %v555
      %v602 = vunpack.c.h.b16 %v555
      %v603 = vunpack.c.l.b16 %v556
      %v604 = vunpack.c.h.b16 %v556
      %v605 = vpack.c.b16 %v573, %v573
      %v606 = vpack.c.b16 %v574, %v574
      %v607 = vpack.c.b16 %v575, %v575
      %v608 = vpack.c.b16 %v576, %v576
      %v609 = vpack.c.b16 %v577, %v577
      %v610 = vpack.c.b16 %v578, %v578
      %v611 = vpack.c.b16 %v579, %v579
      %v612 = vpack.c.b16 %v580, %v580
      %v613 = vpack.c.b16 %v581, %v581
      %v614 = vpack.c.b16 %v582, %v582
      %v615 = vpack.c.b16 %v583, %v583
      %v616 = vpack.c.b16 %v584, %v584
      %v617 = vpack.c.b16 %v585, %v585
      %v618 = vpack.c.b16 %v586, %v586
      %v619 = vpack.c.b16 %v587, %v587
      %v620 = vpack.c.b16 %v588, %v588
      %v621 = vpack.c.b16 %v589, %v589
      %v622 = vpack.c.b16 %v590, %v590
      %v623 = vpack.c.b16 %v591, %v591
      %v624 = vpack.c.b16 %v592, %v592
      %v625 = vpack.c.b16 %v593, %v593
      %v626 = vpack.c.b16 %v594, %v594
      %v627 = vpack.c.b16 %v595, %v595
      %v628 = vpack.c.b16 %v596, %v596
      %v629 = vpack.c.b16 %v597, %v597
      %v630 = vpack.c.b16 %v598, %v598
      %v631 = vpack.c.b16 %v599, %v599
      %v632 = vpack.c.b16 %v600, %v600
      %v633 = vpack.c.b16 %v601, %v601
      %v634 = vpack.c.b16 %v602, %v602
      %v635 = vpack.c.b16 %v603, %v603
      %v636 = vpack.c.b16 %v604, %v604
      %vm669 = vcmask 60416
      %670 = vst.msk [vmem:[%s172] sm:$0xf] %vm669, %v605
      %671 = vst.msk [vmem:[%s172 + $0x4] sm:$0xf] %vm669, %v606
      %672 = vst.msk [vmem:[%s172 + $0x8] sm:$0xf] %vm669, %v607
      %673 = vst.msk [vmem:[%s172 + $0xc] sm:$0xf] %vm669, %v608
      %674 = vst.msk [vmem:[%s172 + $0x10] sm:$0xf] %vm669, %v609
      %675 = vst.msk [vmem:[%s172 + $0x14] sm:$0xf] %vm669, %v610
      %676 = vst.msk [vmem:[%s172 + $0x18] sm:$0xf] %vm669, %v611
      %677 = vst.msk [vmem:[%s172 + $0x1c] sm:$0xf] %vm669, %v612
      %678 = vst.msk [vmem:[%s172 + $0x20] sm:$0xf] %vm669, %v613
      %679 = vst.msk [vmem:[%s172 + $0x24] sm:$0xf] %vm669, %v614
      %680 = vst.msk [vmem:[%s172 + $0x28] sm:$0xf] %vm669, %v615
      %681 = vst.msk [vmem:[%s172 + $0x2c] sm:$0xf] %vm669, %v616
      %682 = vst.msk [vmem:[%s172 + $0x30] sm:$0xf] %vm669, %v617
      %683 = vst.msk [vmem:[%s172 + $0x34] sm:$0xf] %vm669, %v618
      %684 = vst.msk [vmem:[%s172 + $0x38] sm:$0xf] %vm669, %v619
      %685 = vst.msk [vmem:[%s172 + $0x3c] sm:$0xf] %vm669, %v620
      %686 = vst.msk [vmem:[%s172 + $0x40] sm:$0xf] %vm669, %v621
      %687 = vst.msk [vmem:[%s172 + $0x44] sm:$0xf] %vm669, %v622
      %688 = vst.msk [vmem:[%s172 + $0x48] sm:$0xf] %vm669, %v623
      %689 = vst.msk [vmem:[%s172 + $0x4c] sm:$0xf] %vm669, %v624
      %690 = vst.msk [vmem:[%s172 + $0x50] sm:$0xf] %vm669, %v625
      %691 = vst.msk [vmem:[%s172 + $0x54] sm:$0xf] %vm669, %v626
      %692 = vst.msk [vmem:[%s172 + $0x58] sm:$0xf] %vm669, %v627
      %693 = vst.msk [vmem:[%s172 + $0x5c] sm:$0xf] %vm669, %v628
      %694 = vst.msk [vmem:[%s172 + $0x60] sm:$0xf] %vm669, %v629
      %695 = vst.msk [vmem:[%s172 + $0x64] sm:$0xf] %vm669, %v630
      %696 = vst.msk [vmem:[%s172 + $0x68] sm:$0xf] %vm669, %v631
      %697 = vst.msk [vmem:[%s172 + $0x6c] sm:$0xf] %vm669, %v632
      %698 = vst.msk [vmem:[%s172 + $0x70] sm:$0xf] %vm669, %v633
      %699 = vst.msk [vmem:[%s172 + $0x74] sm:$0xf] %vm669, %v634
      %700 = vst.msk [vmem:[%s172 + $0x78] sm:$0xf] %vm669, %v635
      %701 = vst.msk [vmem:[%s172 + $0x7c] sm:$0xf] %vm669, %v636
      %s702 = smul.u32 32, %s14
      %p703 = scmp.lt.s32.totalorder %s702, 63
      %s704 = scalar_select %p703, %s702, 63
      %s705 = smul.addr %s704, 4
      %s706 = scalar_lea.vmem %s3, %s705
      // Predicated region
      $region33: #{bottleneck_forward.3} parent=31 // pred_check
        %p707 = pneg %p100
      $region34: #{bottleneck_forward.3} parent=31 // pred_check_branch
        %709 = sbr.rel (%p707) target = $region36
      $region35: #{bottleneck_forward.3} parent=31 // pred_region
        %s710 = smul.u32 32, %s14
      $region36: #{bottleneck_forward.3} parent=31 // pred_fallthru
        _
    $region32: #{bottleneck_forward.3} parent=5 // pred_fallthru
      _
    %p711 = scmp.le.s32.totalorder 2, %s9
    // Predicated region
    $region37: #{bottleneck_forward.3} parent=5 // pred_check
      %p712 = pneg %p711
    $region38: #{bottleneck_forward.3} parent=5 // pred_check_branch
      %714 = sbr.rel (%p712) target = $region40
    $region39: #{bottleneck_forward.3} parent=5 // pred_region
      %s715 = ssub.s32 %s9, 2
      // Predicated region
      $region41: #{bottleneck_forward.3} parent=39 // pred_check
        %p716 = pneg %p106
      $region42: #{bottleneck_forward.3} parent=39 // pred_check_branch
        %718 = sbr.rel (%p716) target = $region44
      $region43: #{bottleneck_forward.3} parent=39 // pred_region
        %s719 = smul.u32 32, %s15
        %p720 = scmp.lt.s32.totalorder %s719, 63
        %s721 = scalar_select %p720, %s719, 63
        %s722 = smul.addr %s721, 4
        %s723 = scalar_lea.vmem %s3, %s722
      $region44: #{bottleneck_forward.3} parent=39 // pred_fallthru
        _
    $region40: #{bottleneck_forward.3} parent=5 // pred_fallthru
      _
  $region6: #{bottleneck_forward.3} parent=0 // loop_footer
    %s13 = sadd.s32 1, %s9
  $region7: #{bottleneck_forward.3} parent=0 // loop_footer_branch
    %8 = sbr.rel target = $region3
  $region8: #{bottleneck_forward.3} parent=0 // loop_exit
    _

// kernel: bottleneck_forward.5
$region0: #{bottleneck_forward.5}
  #allocation0 [shape = 'u32[]', space=smem, size = 0x4, offset = 0x4, fixed_abs, tag = 'smem constant byte address 0x4 - core index']
  #allocation1 [shape = 'u32[144,128]{1,0:T(1,128)}', space=vmem, size = 0x12000, scoped, tag = 'internal scratch']
  %s0 = inlined_call_operand.vmem [shape: bf16[128,8], index: 0, kind: input, shape index: {}]
  %s1 = inlined_call_operand.vmem [shape: bf16[8,16], index: 1, kind: input, shape index: {}]
  %s2 = inlined_call_operand.vmem [shape: f32[1,16], index: 2, kind: input, shape index: {}]
  %s3 = inlined_call_operand.vmem [shape: bf16[128,8], index: 3, kind: input, shape index: {}]
  %s4 = inlined_call_operand.vmem [shape: bf16[8,16], index: 4, kind: input, shape index: {}]
  %s5 = inlined_call_operand.hbm [shape: f32[128,16], index: 5, kind: output, shape index: {}]
  %s6 = sld [smem:[#allocation0]]
  $region53: #{bottleneck_forward.5} parent=0
    _
  %s8 = ssub.s32 1, %s6
  %s9 = scalar_select 0, %s8, %s6
  $region1: #{bottleneck_forward.5} parent=0
    #allocation2 [shape = 'u8[65536]{0}', space=vmem, size = 0x10000, scoped, tag = 'output window, operand 0']
    #allocation3 [shape = 's32[2]{0}', space=sflag, size = 0x8, scoped, tag = 'scoped memory for bottleneck_forward.5']
    %10 = vsyncpa [#allocation3], 0
    %s11 = scalar_lea.sflag [#allocation3], 1
    %12 = vsyncpa %s11, 0
    loop: start=0, step=1, limit=4
    $region2: #{bottleneck_forward.5} parent=1 // loop_pre_header
      _
    $region3: #{bottleneck_forward.5} parent=1 // loop_header
      %s14 = sphi 0, %s18
      %p15 = scmp.ge.s32.totalorder %s14, 4
      %s24 = sphi 0, %s26
      %s27 = sphi 0, %s24
      %s28 = sphi 0, %s27
      %s44 = sphi 0, %s28
      %s48 = sphi 0, %s48
      %s50 = sphi 0, %s48
      %s51 = sphi 0, %s50
      %s65 = sphi 0, %s51
      %s69 = sphi 0, %s69
      %s71 = sphi 0, %s69
      %s72 = sphi 0, %s71
      %s86 = sphi 0, %s72
      %s92 = sphi 0, %s94
      %s95 = sphi 0, %s92
      %s96 = sphi 0, %s95
      %s112 = sphi 0, %s96
      %s116 = sphi 0, %s116
      %s118 = sphi 0, %s116
      %s119 = sphi 0, %s118
      %s133 = sphi 0, %s119
      %s139 = sphi 0, %s141
      %s142 = sphi 0, %s139
      %s143 = sphi 0, %s142
      %s159 = sphi 0, %s143
    $region4: #{bottleneck_forward.5} parent=1 // loop_header_branch
      %17 = sbr.rel (%p15) target = $region8
    $region5: #{bottleneck_forward.5} parent=1 // loop_body
      %s19 = ssub.s32 %s14, 1
      %s20 = ssub.s32 %s14, 2
      %s21 = sadd.s32 %s14, 1
      %s22 = ssub.s32 %s14, %s21
      %p23 = scmp.eq.s32.totalorder %s22, 0
      %s25 = sadd.s32 %s24, 1
      %s26 = scalar_select %p23, %s24, %s25
      %p29 = pneg %p23
      %p30 = scmp.eq.s32.totalorder %s14, 1
      %p31 = por %p29, %p30
      %p32 = scmp.ne.s32.totalorder %s24, %s27
      %p33 = scmp.eq.s32.totalorder %s14, 0
      %p34 = por %p32, %p33
      %p35 = scmp.ne.s32.totalorder %s24, %s27
      %p36 = scmp.eq.s32.totalorder %s19, 1
      %p37 = por %p35, %p36
      %p38 = scmp.ne.s32.totalorder %s27, %s28
      %p39 = scmp.eq.s32.totalorder %s19, 0
      %p40 = por %p38, %p39
      %p41 = scmp.ne.s32.totalorder %s27, %s28
      %p42 = scmp.eq.s32.totalorder %s20, 1
      %p43 = por %p41, %p42
      %p45 = scmp.ne.s32.totalorder %s28, %s44
      %p46 = scmp.eq.s32.totalorder %s20, 0
      %p47 = por %p45, %p46
      %s49 = sadd.s32 %s48, 1
      %p52 = scmp.eq.s32.totalorder %s14, 1
      %p53 = scmp.ne.s32.totalorder %s48, %s50
      %p54 = scmp.eq.s32.totalorder %s14, 0
      %p55 = por %p53, %p54
      %p56 = scmp.ne.s32.totalorder %s48, %s50
      %p57 = scmp.eq.s32.totalorder %s19, 1
      %p58 = por %p56, %p57
      %p59 = scmp.ne.s32.totalorder %s50, %s51
      %p60 = scmp.eq.s32.totalorder %s19, 0
      %p61 = por %p59, %p60
      %p62 = scmp.ne.s32.totalorder %s50, %s51
      %p63 = scmp.eq.s32.totalorder %s20, 1
      %p64 = por %p62, %p63
      %p66 = scmp.ne.s32.totalorder %s51, %s65
      %p67 = scmp.eq.s32.totalorder %s20, 0
      %p68 = por %p66, %p67
      %s70 = sadd.s32 %s69, 1
      %p73 = scmp.eq.s32.totalorder %s14, 1
      %p74 = scmp.ne.s32.totalorder %s69, %s71
      %p75 = scmp.eq.s32.totalorder %s14, 0
      %p76 = por %p74, %p75
      %p77 = scmp.ne.s32.totalorder %s69, %s71
      %p78 = scmp.eq.s32.totalorder %s19, 1
      %p79 = por %p77, %p78
      %p80 = scmp.ne.s32.totalorder %s71, %s72
      %p81 = scmp.eq.s32.totalorder %s19, 0
      %p82 = por %p80, %p81
      %p83 = scmp.ne.s32.totalorder %s71, %s72
      %p84 = scmp.eq.s32.totalorder %s20, 1
      %p85 = por %p83, %p84
      %p87 = scmp.ne.s32.totalorder %s72, %s86
      %p88 = scmp.eq.s32.totalorder %s20, 0
      %p89 = por %p87, %p88
      %s90 = ssub.s32 %s14, %s21
      %p91 = scmp.eq.s32.totalorder %s90, 0
      %s93 = sadd.s32 %s92, 1
      %s94 = scalar_select %p91, %s92, %s93
      %p97 = pneg %p91
      %p98 = scmp.eq.s32.totalorder %s14, 1
      %p99 = por %p97, %p98
      %p100 = scmp.ne.s32.totalorder %s92, %s95
      %p101 = scmp.eq.s32.totalorder %s14, 0
      %p102 = por %p100, %p101
      %p103 = scmp.ne.s32.totalorder %s92, %s95
      %p104 = scmp.eq.s32.totalorder %s19, 1
      %p105 = por %p103, %p104
      %p106 = scmp.ne.s32.totalorder %s95, %s96
      %p107 = scmp.eq.s32.totalorder %s19, 0
      %p108 = por %p106, %p107
      %p109 = scmp.ne.s32.totalorder %s95, %s96
      %p110 = scmp.eq.s32.totalorder %s20, 1
      %p111 = por %p109, %p110
      %p113 = scmp.ne.s32.totalorder %s96, %s112
      %p114 = scmp.eq.s32.totalorder %s20, 0
      %p115 = por %p113, %p114
      %s117 = sadd.s32 %s116, 1
      %p120 = scmp.eq.s32.totalorder %s14, 1
      %p121 = scmp.ne.s32.totalorder %s116, %s118
      %p122 = scmp.eq.s32.totalorder %s14, 0
      %p123 = por %p121, %p122
      %p124 = scmp.ne.s32.totalorder %s116, %s118
      %p125 = scmp.eq.s32.totalorder %s19, 1
      %p126 = por %p124, %p125
      %p127 = scmp.ne.s32.totalorder %s118, %s119
      %p128 = scmp.eq.s32.totalorder %s19, 0
      %p129 = por %p127, %p128
      %p130 = scmp.ne.s32.totalorder %s118, %s119
      %p131 = scmp.eq.s32.totalorder %s20, 1
      %p132 = por %p130, %p131
      %p134 = scmp.ne.s32.totalorder %s119, %s133
      %p135 = scmp.eq.s32.totalorder %s20, 0
      %p136 = por %p134, %p135
      %s137 = ssub.s32 %s14, %s21
      %p138 = scmp.eq.s32.totalorder %s137, 0
      %s140 = sadd.s32 %s139, 1
      %s141 = scalar_select %p138, %s139, %s140
      %p144 = pneg %p138
      %p145 = scmp.eq.s32.totalorder %s14, 1
      %p146 = por %p144, %p145
      %p147 = scmp.ne.s32.totalorder %s139, %s142
      %p148 = scmp.eq.s32.totalorder %s14, 0
      %p149 = por %p147, %p148
      %p150 = scmp.ne.s32.totalorder %s139, %s142
      %p151 = scmp.eq.s32.totalorder %s19, 1
      %p152 = por %p150, %p151
      %p153 = scmp.ne.s32.totalorder %s142, %s143
      %p154 = scmp.eq.s32.totalorder %s19, 0
      %p155 = por %p153, %p154
      %p156 = scmp.ne.s32.totalorder %s142, %s143
      %p157 = scmp.eq.s32.totalorder %s20, 1
      %p158 = por %p156, %p157
      %p160 = scmp.ne.s32.totalorder %s143, %s159
      %p161 = scmp.eq.s32.totalorder %s20, 0
      %p162 = por %p160, %p161
      %p163 = scmp.le.s32.totalorder 1, %s14
      %p164 = scmp.lt.s32.totalorder %s14, 3
      %p165 = pnand %p163, %p164
      %p166 = pneg %p165
      // Predicated region
      $region9: #{bottleneck_forward.5} parent=5 // pred_check
        _
      $region10: #{bottleneck_forward.5} parent=5 // pred_check_branch
        %168 = sbr.rel (%p165) target = $region12
      $region11: #{bottleneck_forward.5} parent=5 // pred_region
        %s169 = ssub.s32 %s14, 1
        // Predicated region
        $region13: #{bottleneck_forward.5} parent=11 // pred_check
          %p170 = pneg %p61
        $region14: #{bottleneck_forward.5} parent=11 // pred_check_branch
          %172 = sbr.rel (%p170) target = $region16
        $region15: #{bottleneck_forward.5} parent=11 // pred_region
          _
        $region16: #{bottleneck_forward.5} parent=11 // pred_fallthru
          _
        // Predicated region
        $region17: #{bottleneck_forward.5} parent=11 // pred_check
          %p173 = pneg %p82
        $region18: #{bottleneck_forward.5} parent=11 // pred_check_branch
          %175 = sbr.rel (%p173) target = $region20
        $region19: #{bottleneck_forward.5} parent=11 // pred_region
          _
        $region20: #{bottleneck_forward.5} parent=11 // pred_fallthru
          _
        // Predicated region
        $region21: #{bottleneck_forward.5} parent=11 // pred_check
          %p176 = pneg %p129
        $region22: #{bottleneck_forward.5} parent=11 // pred_check_branch
          %178 = sbr.rel (%p176) target = $region24
        $region23: #{bottleneck_forward.5} parent=11 // pred_region
          _
        $region24: #{bottleneck_forward.5} parent=11 // pred_fallthru
          _
      $region12: #{bottleneck_forward.5} parent=5 // pred_fallthru
        _
      %p179 = scmp.lt.s32.totalorder %s14, 2
      // Predicated region
      $region25: #{bottleneck_forward.5} parent=5 // pred_check
        %p180 = pneg %p179
      $region26: #{bottleneck_forward.5} parent=5 // pred_check_branch
        %182 = sbr.rel (%p180) target = $region28
      $region27: #{bottleneck_forward.5} parent=5 // pred_region
        // Predicated region
        $region29: #{bottleneck_forward.5} parent=27 // pred_check
          %p183 = pneg %p34
        $region30: #{bottleneck_forward.5} parent=27 // pred_check_branch
          %185 = sbr.rel (%p183) target = $region32
        $region31: #{bottleneck_forward.5} parent=27 // pred_region
          %s186 = smul.u32 8, %s14
          %p187 = scmp.lt.s32.totalorder %s186, 15
          %s188 = scalar_select %p187, %s186, 15
          %s189 = smul.addr %s188, 4
          %s190 = scalar_lea.vmem %s0, %s189
          %s191 = smul.u32 8, %s14
        $region32: #{bottleneck_forward.5} parent=27 // pred_fallthru
          _
        // Predicated region
        $region33: #{bottleneck_forward.5} parent=27 // pred_check
          %p192 = pneg %p102
        $region34: #{bottleneck_forward.5} parent=27 // pred_check_branch
          %194 = sbr.rel (%p192) target = $region36
        $region35: #{bottleneck_forward.5} parent=27 // pred_region
          %s195 = smul.u32 8, %s14
          %p196 = scmp.lt.s32.totalorder %s195, 15
          %s197 = scalar_select %p196, %s195, 15
          %s198 = smul.addr %s197, 4
          %s199 = scalar_lea.vmem %s3, %s198
          %s200 = smul.u32 8, %s14
        $region36: #{bottleneck_forward.5} parent=27 // pred_fallthru
          _
      $region28: #{bottleneck_forward.5} parent=5 // pred_fallthru
        _
      %p201 = scmp.le.s32.totalorder 1, %s14
      %p202 = scmp.lt.s32.totalorder %s14, 3
      %p203 = pnand %p201, %p202
      %p204 = pneg %p203
      // Predicated region
      $region37: #{bottleneck_forward.5} parent=5 // pred_check
        _
      $region38: #{bottleneck_forward.5} parent=5 // pred_check_branch
        %206 = sbr.rel (%p203) target = $region40
      $region39: #{bottleneck_forward.5} parent=5 // pred_region
        %s207 = ssub.s32 %s14, 1
        %s208 = smul.u32 8, %s19
        %p209 = scmp.lt.s32.totalorder %s208, 15
        %s210 = scalar_select %p209, %s208, 15
        %s211 = smul.addr %s210, 4
        %s212 = scalar_lea.vmem %s0, %s211
        %p213 = pneg %p40
        %p214 = pneg %p37
        %p215 = pneg %p61
        %p216 = pneg %p58
        %p217 = pneg %p82
        %p218 = pneg %p79
        %s219 = smul.u32 8, %s19
        %p220 = scmp.lt.s32.totalorder %s219, 15
        %s221 = scalar_select %p220, %s219, 15
        %s222 = smul.addr %s221, 4
        %s223 = scalar_lea.vmem %s3, %s222
        %p224 = pneg %p108
        %p225 = pneg %p105
        %p226 = pneg %p129
        %p227 = pneg %p126
        %p228 = pneg %p155
        %p229 = pneg %p152
        %s230 = sand.u32 %s142, 1
        %s231 = scalar_lea.sflag [#allocation3], %s230
        %s232 = sand.u32 %s142, 1
        %s233 = smul.addr %s232, 64
        %s234 = scalar_lea.vmem [#allocation2], %s233
        %s235 = smul.u32 8, %s19
        %p236 = scmp.lt.s32.totalorder %s235, 15
        %s237 = scalar_select %p236, %s235, 15
        %s238 = smul.addr %s237, 4
        %s239 = scalar_lea.vmem %s0, %s238
        %s240 = smul.u32 8, %s19
        %s241 = smul.u32 8, %s19
        %p242 = scmp.lt.s32.totalorder %s241, 15
        %s243 = scalar_select %p242, %s241, 15
        %s244 = smul.addr %s243, 4
        %s245 = scalar_lea.vmem %s3, %s244
        %s246 = smul.u32 8, %s19
        %s247 = smul.u32 8, %s19
        %v249 = vld [vmem:[%s239] sm:$0xf]
        %v250 = vld [vmem:[%s239 + $0x4] sm:$0xf]
        %v251 = vld [vmem:[%s239 + $0x8] sm:$0xf]
        %v252 = vld [vmem:[%s239 + $0xc] sm:$0xf]
        %v253 = vld [vmem:[%s239 + $0x10] sm:$0xf]
        %v254 = vld [vmem:[%s239 + $0x14] sm:$0xf]
        %v255 = vld [vmem:[%s239 + $0x18] sm:$0xf]
        %v256 = vld [vmem:[%s239 + $0x1c] sm:$0xf]
        %v257 = vld [vmem:[%s1] sm:$0xf]
        %v258 = vld [vmem:[%s245] sm:$0xf]
        %v259 = vld [vmem:[%s245 + $0x4] sm:$0xf]
        %v260 = vld [vmem:[%s245 + $0x8] sm:$0xf]
        %v261 = vld [vmem:[%s245 + $0xc] sm:$0xf]
        %v262 = vld [vmem:[%s245 + $0x10] sm:$0xf]
        %v263 = vld [vmem:[%s245 + $0x14] sm:$0xf]
        %v264 = vld [vmem:[%s245 + $0x18] sm:$0xf]
        %v265 = vld [vmem:[%s245 + $0x1c] sm:$0xf]
        %v266 = vld [vmem:[%s4] sm:$0xf]
        %v275 = vunpack.c.l.b16 %v258
        %v276 = vunpack.c.l.b16 %v259
        %v277 = vunpack.c.l.b16 %v260
        %v278 = vunpack.c.l.b16 %v261
        %v279 = vunpack.c.l.b16 %v262
        %v280 = vunpack.c.l.b16 %v263
        %v281 = vunpack.c.l.b16 %v264
        %v282 = vunpack.c.l.b16 %v265
        %v283 = vpack.c.b16 %v276, %v275
        %v284 = vpack.c.b16 %v278, %v277
        %v285 = vpack.c.b16 %v280, %v279
        %v286 = vpack.c.b16 %v282, %v281
        %vm287 = vcmask 64512
        %v289 = vsel %vm287, %v283, 0
        %v292 = vsel %vm287, %v284, 0
        %v295 = vsel %vm287, %v285, 0
        %v298 = vsel %vm287, %v286, 0
        %vm300 = vcmask 1043456
        %v302 = vsel %vm300, %v266, 0
        %304 = vmatprep.subr.bf16.mxu0 0
        %305 = vmatpush1.bf16.msra.mxu0 0
        %306 = vmatprep.subr.bf16.mxu0 0
        %307 = vmatpush1.bf16.msra.mxu0 0
        %308 = vmatprep.subr.bf16.mxu0 0
        %309 = vmatpush1.bf16.msra.mxu0 0
        %310 = vmatprep.subr.bf16.mxu0 0
        %311 = vmatpush1.bf16.msra.mxu0 0
        %312 = vmatprep.subr.bf16.mxu0 0
        %313 = vmatpush1.bf16.msra.mxu0 0
        %314 = vmatprep.subr.bf16.mxu0 0
        %315 = vmatpush1.bf16.msra.mxu0 0
        %316 = vmatprep.subr.bf16.mxu0 0
        %317 = vmatpush1.bf16.msra.mxu0 0
        %318 = vmatprep.subr.bf16.mxu0 0
        %319 = vmatpush1.bf16.msra.mxu0 %v302
        %320 = vmatprep.subr.bf16.mxu0 0
        %321 = vmatpush2.bf16.msra.mxu0 0
        %322 = vmatprep.subr.bf16.mxu0 0
        %323 = vmatpush2.bf16.msra.mxu0 0
        %324 = vmatprep.subr.bf16.mxu0 0
        %325 = vmatpush2.bf16.msra.mxu0 0
        %326 = vmatprep.subr.bf16.mxu0 0
        %327 = vmatpush2.bf16.msra.mxu0 0
        %328 = vmatprep.subr.bf16.mxu0 0
        %329 = vmatpush2.bf16.msra.mxu0 0
        %330 = vmatprep.subr.bf16.mxu0 0
        %331 = vmatpush2.bf16.msra.mxu0 0
        %332 = vmatprep.subr.bf16.mxu0 0
        %333 = vmatpush2.bf16.msra.mxu0 0
        %334 = vmatprep.subr.bf16.mxu0 0
        %335 = vmatpush2.bf16.msra.mxu0 0
        %336 = vmatprep.mubr.bf16.mxu0 0
        %337 = vmatmul.mubr.bf16.gmra.mxu0 %v289
        %v338 = vpop.f32.mrf.mxu0
        %v339 = vadd.f32 0.0, %v338
        %v340 = vpop.f32.mrf.mxu0
        %v341 = vpop.f32.mrf.mxu0
        %v342 = vadd.f32 0.0, %v341
        %v343 = vpop.f32.mrf.mxu0
        %344 = vmatprep.mubr.bf16.mxu0 0
        %345 = vmatmul.mubr.bf16.gmra.mxu0 %v292
        %v346 = vpop.f32.mrf.mxu0
        %v347 = vadd.f32 0.0, %v346
        %v348 = vpop.f32.mrf.mxu0
        %v349 = vpop.f32.mrf.mxu0
        %v350 = vadd.f32 0.0, %v349
        %v351 = vpop.f32.mrf.mxu0
        %352 = vmatprep.mubr.bf16.mxu0 0
        %353 = vmatmul.mubr.bf16.gmra.mxu0 %v295
        %v354 = vpop.f32.mrf.mxu0
        %v355 = vadd.f32 0.0, %v354
        %v356 = vpop.f32.mrf.mxu0
        %v357 = vpop.f32.mrf.mxu0
        %v358 = vadd.f32 0.0, %v357
        %v359 = vpop.f32.mrf.mxu0
        %360 = vmatprep.mubr.bf16.mxu0 0
        %361 = vmatmul.mubr.bf16.gmra.mxu0 %v298
        %v362 = vpop.f32.mrf.mxu0
        %v363 = vadd.f32 0.0, %v362
        %v364 = vpop.f32.mrf.mxu0
        %v365 = vpop.f32.mrf.mxu0
        %v366 = vadd.f32 0.0, %v365
        %v367 = vpop.f32.mrf.mxu0
        %368 = vdwg.mxu0
        %v377 = vunpack.c.l.b16 %v249
        %v378 = vunpack.c.l.b16 %v250
        %v379 = vunpack.c.l.b16 %v251
        %v380 = vunpack.c.l.b16 %v252
        %v381 = vunpack.c.l.b16 %v253
        %v382 = vunpack.c.l.b16 %v254
        %v383 = vunpack.c.l.b16 %v255
        %v384 = vunpack.c.l.b16 %v256
        %v385 = vpack.c.b16 %v378, %v377
        %v386 = vpack.c.b16 %v380, %v379
        %v387 = vpack.c.b16 %v382, %v381
        %v388 = vpack.c.b16 %v384, %v383
        %v390 = vsel %vm287, %v385, 0
        %v393 = vsel %vm287, %v386, 0
        %v396 = vsel %vm287, %v387, 0
        %v399 = vsel %vm287, %v388, 0
        %v402 = vsel %vm300, %v257, 0
        %404 = vmatprep.subr.bf16.mxu0 0
        %405 = vmatpush1.bf16.msra.mxu0 0
        %406 = vmatprep.subr.bf16.mxu0 0
        %407 = vmatpush1.bf16.msra.mxu0 0
        %408 = vmatprep.subr.bf16.mxu0 0
        %409 = vmatpush1.bf16.msra.mxu0 0
        %410 = vmatprep.subr.bf16.mxu0 0
        %411 = vmatpush1.bf16.msra.mxu0 0
        %412 = vmatprep.subr.bf16.mxu0 0
        %413 = vmatpush1.bf16.msra.mxu0 0
        %414 = vmatprep.subr.bf16.mxu0 0
        %415 = vmatpush1.bf16.msra.mxu0 0
        %416 = vmatprep.subr.bf16.mxu0 0
        %417 = vmatpush1.bf16.msra.mxu0 0
        %418 = vmatprep.subr.bf16.mxu0 0
        %419 = vmatpush1.bf16.msra.mxu0 %v402
        %420 = vmatprep.subr.bf16.mxu0 0
        %421 = vmatpush2.bf16.msra.mxu0 0
        %422 = vmatprep.subr.bf16.mxu0 0
        %423 = vmatpush2.bf16.msra.mxu0 0
        %424 = vmatprep.subr.bf16.mxu0 0
        %425 = vmatpush2.bf16.msra.mxu0 0
        %426 = vmatprep.subr.bf16.mxu0 0
        %427 = vmatpush2.bf16.msra.mxu0 0
        %428 = vmatprep.subr.bf16.mxu0 0
        %429 = vmatpush2.bf16.msra.mxu0 0
        %430 = vmatprep.subr.bf16.mxu0 0
        %431 = vmatpush2.bf16.msra.mxu0 0
        %432 = vmatprep.subr.bf16.mxu0 0
        %433 = vmatpush2.bf16.msra.mxu0 0
        %434 = vmatprep.subr.bf16.mxu0 0
        %435 = vmatpush2.bf16.msra.mxu0 0
        %436 = vmatprep.mubr.bf16.mxu0 0
        %437 = vmatmul.mubr.bf16.gmra.mxu0 %v390
        %v438 = vpop.f32.mrf.mxu0
        %v439 = vadd.f32 %v339, %v438
        %v440 = vpop.f32.mrf.mxu0
        %v441 = vpop.f32.mrf.mxu0
        %v442 = vadd.f32 %v342, %v441
        %v443 = vpop.f32.mrf.mxu0
        %444 = vmatprep.mubr.bf16.mxu0 0
        %445 = vmatmul.mubr.bf16.gmra.mxu0 %v393
        %v446 = vpop.f32.mrf.mxu0
        %v447 = vadd.f32 %v347, %v446
        %v448 = vpop.f32.mrf.mxu0
        %v449 = vpop.f32.mrf.mxu0
        %v450 = vadd.f32 %v350, %v449
        %v451 = vpop.f32.mrf.mxu0
        %452 = vmatprep.mubr.bf16.mxu0 0
        %453 = vmatmul.mubr.bf16.gmra.mxu0 %v396
        %v454 = vpop.f32.mrf.mxu0
        %v455 = vadd.f32 %v355, %v454
        %v456 = vpop.f32.mrf.mxu0
        %v457 = vpop.f32.mrf.mxu0
        %v458 = vadd.f32 %v358, %v457
        %v459 = vpop.f32.mrf.mxu0
        %460 = vmatprep.mubr.bf16.mxu0 0
        %461 = vmatmul.mubr.bf16.gmra.mxu0 %v399
        %v462 = vpop.f32.mrf.mxu0
        %v463 = vadd.f32 %v363, %v462
        %v464 = vpop.f32.mrf.mxu0
        %v465 = vpop.f32.mrf.mxu0
        %v466 = vadd.f32 %v366, %v465
        %v467 = vpop.f32.mrf.mxu0
        %468 = vdwg.mxu0
        %v469 = vld [vmem:[%s2] sm:$0x1]
        %v471 = vlaneseq
        %v472 = vshrl.u32 %v471, 7
        %v473 = vsub.s32 0, %v472
        %v474 = vrot.slane %v469, %v473
        %v476 = vadd.f32 %v439, %v474
        %v477 = vadd.f32 %v442, %v474
        %v478 = vadd.f32 %v447, %v474
        %v479 = vadd.f32 %v450, %v474
        %v480 = vadd.f32 %v455, %v474
        %v481 = vadd.f32 %v458, %v474
        %v482 = vadd.f32 %v463, %v474
        %v483 = vadd.f32 %v466, %v474
        %v484 = vmax.f32 %v476, 0.0
        %v485 = vmax.f32 %v477, 0.0
        %v486 = vmax.f32 %v478, 0.0
        %v487 = vmax.f32 %v479, 0.0
        %v488 = vmax.f32 %v480, 0.0
        %v489 = vmax.f32 %v481, 0.0
        %v490 = vmax.f32 %v482, 0.0
        %v491 = vmax.f32 %v483, 0.0
        %vm492 = vcmask 130048
        %493 = vst.msk [vmem:[%s234] sm:$0xff] %vm492, %v484
        %494 = vst.msk [vmem:[%s234 + $0x8] sm:$0xff] %vm492, %v485
        %495 = vst.msk [vmem:[%s234 + $0x10] sm:$0xff] %vm492, %v486
        %496 = vst.msk [vmem:[%s234 + $0x18] sm:$0xff] %vm492, %v487
        %497 = vst.msk [vmem:[%s234 + $0x20] sm:$0xff] %vm492, %v488
        %498 = vst.msk [vmem:[%s234 + $0x28] sm:$0xff] %vm492, %v489
        %499 = vst.msk [vmem:[%s234 + $0x30] sm:$0xff] %vm492, %v490
        %500 = vst.msk [vmem:[%s234 + $0x38] sm:$0xff] %vm492, %v491
        %s501 = sand.u32 %s142, 1
        %s502 = scalar_lea.sflag [#allocation3], %s501
        %s503 = sand.u32 %s142, 1
        %s504 = smul.addr %s503, 64
        %s505 = scalar_lea.vmem [#allocation2], %s504
        // Predicated region
        $region41: #{bottleneck_forward.5} parent=39 // pred_check
          %p506 = pneg %p152
        $region42: #{bottleneck_forward.5} parent=39 // pred_check_branch
          %508 = sbr.rel (%p506) target = $region44
        $region43: #{bottleneck_forward.5} parent=39 // pred_region
          %s509 = smul.u32 8, %s19
          %s511 = ssub.s32 1024, 1024
          %512 = vsyncadd %s502, %s511
          %s513 = smul.addr %s509, 128
          %s514 = scalar_lea.hbm %s5, %s513
          %s515 = sshll.u32 %s505, 4
          %s516 = int_to_ptr.vmem [resolvable:$true] %s515
          %521 = dma.vmem_to_hbm [thread:$0]  %s516, 1024, %s514, %s502, 128, 128, 8
        $region44: #{bottleneck_forward.5} parent=39 // pred_fallthru
          _
      $region40: #{bottleneck_forward.5} parent=5 // pred_fallthru
        _
      %p522 = scmp.le.s32.totalorder 2, %s14
      // Predicated region
      $region45: #{bottleneck_forward.5} parent=5 // pred_check
        %p523 = pneg %p522
      $region46: #{bottleneck_forward.5} parent=5 // pred_check_branch
        %525 = sbr.rel (%p523) target = $region48
      $region47: #{bottleneck_forward.5} parent=5 // pred_region
        %s526 = ssub.s32 %s14, 2
        // Predicated region
        $region49: #{bottleneck_forward.5} parent=47 // pred_check
          %p527 = pneg %p158
        $region50: #{bottleneck_forward.5} parent=47 // pred_check_branch
          %529 = sbr.rel (%p527) target = $region52
        $region51: #{bottleneck_forward.5} parent=47 // pred_region
          %s530 = sand.u32 %s143, 1
          %s531 = scalar_lea.sflag [#allocation3], %s530
          %s532 = sand.u32 %s143, 1
          %s533 = smul.addr %s532, 64
          %s534 = scalar_lea.vmem [#allocation2], %s533
          %535 = dma.done %s531, 1024
        $region52: #{bottleneck_forward.5} parent=47 // pred_fallthru
          _
      $region48: #{bottleneck_forward.5} parent=5 // pred_fallthru
        _
    $region6: #{bottleneck_forward.5} parent=1 // loop_footer
      %s18 = sadd.s32 1, %s14
    $region7: #{bottleneck_forward.5} parent=1 // loop_footer_branch
      %13 = sbr.rel target = $region3
    $region8: #{bottleneck_forward.5} parent=1 // loop_exit
      _
    %536 = vsyncpa [#allocation3], 1
    %s537 = scalar_lea.sflag [#allocation3], 1
    %538 = vsyncpa %s537, 1

// kernel: bottleneck_forward.4
$region0: #{bottleneck_forward.4}
  #allocation0 [shape = 'u32[]', space=smem, size = 0x4, offset = 0x4, fixed_abs, tag = 'smem constant byte address 0x4 - core index']
  #allocation1 [shape = 'u32[144,128]{1,0:T(1,128)}', space=vmem, size = 0x12000, scoped, tag = 'internal scratch']
  %s0 = inlined_call_operand.vmem [shape: f32[2,36,9,8], index: 0, kind: input, shape index: {}]
  %s1 = inlined_call_operand.vmem [shape: bf16[9,8,8], index: 1, kind: input, shape index: {}]
  %s2 = inlined_call_operand.vmem [shape: f32[1,8], index: 2, kind: input, shape index: {}]
  %s3 = inlined_call_operand.vmem [shape: bf16[2,64,8], index: 3, kind: output, shape index: {}]
  %s4 = sld [smem:[#allocation0]]
  $region45: #{bottleneck_forward.4} parent=0
    _
  %s6 = ssub.s32 1, %s4
  %s7 = scalar_select 0, %s6, %s4
  loop: start=0, step=1, limit=4
  $region2: #{bottleneck_forward.4} parent=0 // loop_pre_header
    _
  $region3: #{bottleneck_forward.4} parent=0 // loop_header
    %s9 = sphi 0, %s13
    %p10 = scmp.ge.s32.totalorder %s9, 4
    %s19 = sphi 0, %s21
    %s22 = sphi 0, %s19
    %s23 = sphi 0, %s22
    %s39 = sphi 0, %s23
    %s43 = sphi 0, %s43
    %s45 = sphi 0, %s43
    %s46 = sphi 0, %s45
    %s60 = sphi 0, %s46
    %s64 = sphi 0, %s64
    %s66 = sphi 0, %s64
    %s67 = sphi 0, %s66
    %s81 = sphi 0, %s67
    %s87 = sphi 0, %s89
    %s90 = sphi 0, %s87
    %s91 = sphi 0, %s90
    %s107 = sphi 0, %s91
  $region4: #{bottleneck_forward.4} parent=0 // loop_header_branch
    %12 = sbr.rel (%p10) target = $region8
  $region5: #{bottleneck_forward.4} parent=0 // loop_body
    %s14 = ssub.s32 %s9, 1
    %s15 = ssub.s32 %s9, 2
    %s16 = sadd.s32 %s9, 1
    %s17 = ssub.s32 %s9, %s16
    %p18 = scmp.eq.s32.totalorder %s17, 0
    %s20 = sadd.s32 %s19, 1
    %s21 = scalar_select %p18, %s19, %s20
    %p24 = pneg %p18
    %p25 = scmp.eq.s32.totalorder %s9, 1
    %p26 = por %p24, %p25
    %p27 = scmp.ne.s32.totalorder %s19, %s22
    %p28 = scmp.eq.s32.totalorder %s9, 0
    %p29 = por %p27, %p28
    %p30 = scmp.ne.s32.totalorder %s19, %s22
    %p31 = scmp.eq.s32.totalorder %s14, 1
    %p32 = por %p30, %p31
    %p33 = scmp.ne.s32.totalorder %s22, %s23
    %p34 = scmp.eq.s32.totalorder %s14, 0
    %p35 = por %p33, %p34
    %p36 = scmp.ne.s32.totalorder %s22, %s23
    %p37 = scmp.eq.s32.totalorder %s15, 1
    %p38 = por %p36, %p37
    %p40 = scmp.ne.s32.totalorder %s23, %s39
    %p41 = scmp.eq.s32.totalorder %s15, 0
    %p42 = por %p40, %p41
    %s44 = sadd.s32 %s43, 1
    %p47 = scmp.eq.s32.totalorder %s9, 1
    %p48 = scmp.ne.s32.totalorder %s43, %s45
    %p49 = scmp.eq.s32.totalorder %s9, 0
    %p50 = por %p48, %p49
    %p51 = scmp.ne.s32.totalorder %s43, %s45
    %p52 = scmp.eq.s32.totalorder %s14, 1
    %p53 = por %p51, %p52
    %p54 = scmp.ne.s32.totalorder %s45, %s46
    %p55 = scmp.eq.s32.totalorder %s14, 0
    %p56 = por %p54, %p55
    %p57 = scmp.ne.s32.totalorder %s45, %s46
    %p58 = scmp.eq.s32.totalorder %s15, 1
    %p59 = por %p57, %p58
    %p61 = scmp.ne.s32.totalorder %s46, %s60
    %p62 = scmp.eq.s32.totalorder %s15, 0
    %p63 = por %p61, %p62
    %s65 = sadd.s32 %s64, 1
    %p68 = scmp.eq.s32.totalorder %s9, 1
    %p69 = scmp.ne.s32.totalorder %s64, %s66
    %p70 = scmp.eq.s32.totalorder %s9, 0
    %p71 = por %p69, %p70
    %p72 = scmp.ne.s32.totalorder %s64, %s66
    %p73 = scmp.eq.s32.totalorder %s14, 1
    %p74 = por %p72, %p73
    %p75 = scmp.ne.s32.totalorder %s66, %s67
    %p76 = scmp.eq.s32.totalorder %s14, 0
    %p77 = por %p75, %p76
    %p78 = scmp.ne.s32.totalorder %s66, %s67
    %p79 = scmp.eq.s32.totalorder %s15, 1
    %p80 = por %p78, %p79
    %p82 = scmp.ne.s32.totalorder %s67, %s81
    %p83 = scmp.eq.s32.totalorder %s15, 0
    %p84 = por %p82, %p83
    %s85 = ssub.s32 %s9, %s16
    %p86 = scmp.eq.s32.totalorder %s85, 0
    %s88 = sadd.s32 %s87, 1
    %s89 = scalar_select %p86, %s87, %s88
    %p92 = pneg %p86
    %p93 = scmp.eq.s32.totalorder %s9, 1
    %p94 = por %p92, %p93
    %p95 = scmp.ne.s32.totalorder %s87, %s90
    %p96 = scmp.eq.s32.totalorder %s9, 0
    %p97 = por %p95, %p96
    %p98 = scmp.ne.s32.totalorder %s87, %s90
    %p99 = scmp.eq.s32.totalorder %s14, 1
    %p100 = por %p98, %p99
    %p101 = scmp.ne.s32.totalorder %s90, %s91
    %p102 = scmp.eq.s32.totalorder %s14, 0
    %p103 = por %p101, %p102
    %p104 = scmp.ne.s32.totalorder %s90, %s91
    %p105 = scmp.eq.s32.totalorder %s15, 1
    %p106 = por %p104, %p105
    %p108 = scmp.ne.s32.totalorder %s91, %s107
    %p109 = scmp.eq.s32.totalorder %s15, 0
    %p110 = por %p108, %p109
    %p111 = scmp.le.s32.totalorder 1, %s9
    %p112 = scmp.lt.s32.totalorder %s9, 3
    %p113 = pnand %p111, %p112
    %p114 = pneg %p113
    // Predicated region
    $region9: #{bottleneck_forward.4} parent=5 // pred_check
      _
    $region10: #{bottleneck_forward.4} parent=5 // pred_check_branch
      %116 = sbr.rel (%p113) target = $region12
    $region11: #{bottleneck_forward.4} parent=5 // pred_region
      %s117 = ssub.s32 %s9, 1
      // Predicated region
      $region13: #{bottleneck_forward.4} parent=11 // pred_check
        %p118 = pneg %p56
      $region14: #{bottleneck_forward.4} parent=11 // pred_check_branch
        %120 = sbr.rel (%p118) target = $region16
      $region15: #{bottleneck_forward.4} parent=11 // pred_region
        _
      $region16: #{bottleneck_forward.4} parent=11 // pred_fallthru
        _
      // Predicated region
      $region17: #{bottleneck_forward.4} parent=11 // pred_check
        %p121 = pneg %p77
      $region18: #{bottleneck_forward.4} parent=11 // pred_check_branch
        %123 = sbr.rel (%p121) target = $region20
      $region19: #{bottleneck_forward.4} parent=11 // pred_region
        _
      $region20: #{bottleneck_forward.4} parent=11 // pred_fallthru
        _
    $region12: #{bottleneck_forward.4} parent=5 // pred_fallthru
      _
    %p124 = scmp.lt.s32.totalorder %s9, 2
    // Predicated region
    $region21: #{bottleneck_forward.4} parent=5 // pred_check
      %p125 = pneg %p124
    $region22: #{bottleneck_forward.4} parent=5 // pred_check_branch
      %127 = sbr.rel (%p125) target = $region24
    $region23: #{bottleneck_forward.4} parent=5 // pred_region
      // Predicated region
      $region25: #{bottleneck_forward.4} parent=23 // pred_check
        %p128 = pneg %p29
      $region26: #{bottleneck_forward.4} parent=23 // pred_check_branch
        %130 = sbr.rel (%p128) target = $region28
      $region27: #{bottleneck_forward.4} parent=23 // pred_region
        %p131 = scmp.lt.s32.totalorder %s9, 1
        %s132 = scalar_select %p131, %s9, 1
        %s133 = smul.addr %s132, 72
        %s134 = smul.addr %s133, 8
        %s135 = scalar_lea.vmem %s0, %s134
      $region28: #{bottleneck_forward.4} parent=23 // pred_fallthru
        _
    $region24: #{bottleneck_forward.4} parent=5 // pred_fallthru
      _
    %p136 = scmp.le.s32.totalorder 1, %s9
    %p137 = scmp.lt.s32.totalorder %s9, 3
    %p138 = pnand %p136, %p137
    %p139 = pneg %p138
    // Predicated region
    $region29: #{bottleneck_forward.4} parent=5 // pred_check
      _
    $region30: #{bottleneck_forward.4} parent=5 // pred_check_branch
      %141 = sbr.rel (%p138) target = $region32
    $region31: #{bottleneck_forward.4} parent=5 // pred_region
      %s142 = ssub.s32 %s9, 1
      %p143 = scmp.lt.s32.totalorder %s14, 1
      %s144 = scalar_select %p143, %s14, 1
      %s145 = smul.addr %s144, 72
      %s146 = smul.addr %s145, 8
      %s147 = scalar_lea.vmem %s0, %s146
      %p148 = pneg %p35
      %p149 = pneg %p32
      %p150 = pneg %p56
      %p151 = pneg %p53
      %p152 = pneg %p77
      %p153 = pneg %p74
      %p154 = pneg %p103
      %p155 = pneg %p100
      %p156 = scmp.lt.s32.totalorder %s14, 1
      %s157 = scalar_select %p156, %s14, 1
      %s158 = smul.addr %s157, 8
      %s159 = smul.addr %s158, 4
      %s160 = scalar_lea.vmem %s3, %s159
      %p161 = scmp.lt.s32.totalorder %s14, 1
      %s162 = scalar_select %p161, %s14, 1
      %s163 = smul.addr %s162, 72
      %s164 = smul.addr %s163, 8
      %s165 = scalar_lea.vmem %s0, %s164
      %p166 = scmp.lt.s32.totalorder %s14, 1
      %s167 = scalar_select %p166, %s14, 1
      %s168 = smul.addr %s167, 8
      %s169 = smul.addr %s168, 4
      %s170 = scalar_lea.vmem %s3, %s169
      %v172 = vld [vmem:[%s165] sm:$0xff]
      %v173 = vld [vmem:[%s165 + $0x10] sm:$0xff]
      %v174 = vld [vmem:[%s165 + $0x20] sm:$0xff]
      %v175 = vld [vmem:[%s165 + $0x30] sm:$0xff]
      %v176 = vld [vmem:[%s165 + $0x40] sm:$0xff]
      %v177 = vld [vmem:[%s165 + $0x50] sm:$0xff]
      %v178 = vld [vmem:[%s165 + $0x60] sm:$0xff]
      %v179 = vld [vmem:[%s165 + $0x70] sm:$0xff]
      %v180 = vpack.c.bf16 %v173, %v172
      %v181 = vpack.c.bf16 %v175, %v174
      %v182 = vpack.c.bf16 %v177, %v176
      %v183 = vpack.c.bf16 %v179, %v178
      %v184 = vld [vmem:[%s1] sm:$0xf]
      %s185 = scalar_lea.vmem %s165, 144
      %v186 = vld [vmem:[%s185] sm:$0xff]
      %v187 = vld [vmem:[%s185 + $0x10] sm:$0xff]
      %v188 = vld [vmem:[%s185 + $0x20] sm:$0xff]
      %v189 = vld [vmem:[%s185 + $0x30] sm:$0xff]
      %v190 = vld [vmem:[%s185 + $0x40] sm:$0xff]
      %v191 = vld [vmem:[%s185 + $0x50] sm:$0xff]
      %v192 = vld [vmem:[%s185 + $0x60] sm:$0xff]
      %v193 = vld [vmem:[%s185 + $0x70] sm:$0xff]
      %v194 = vpack.c.bf16 %v187, %v186
      %v195 = vpack.c.bf16 %v189, %v188
      %v196 = vpack.c.bf16 %v191, %v190
      %v197 = vpack.c.bf16 %v193, %v192
      %s198 = scalar_lea.vmem %s1, 4
      %v199 = vld [vmem:[%s198] sm:$0xf]
      %vm200 = vcmask 64512
      %v202 = vsel %vm200, %v194, 0
      %v205 = vsel %vm200, %v195, 0
      %v208 = vsel %vm200, %v196, 0
      %v211 = vsel %vm200, %v197, 0
      %vm213 = vcmask 1043456
      %v215 = vsel %vm213, %v199, 0
      %217 = vmatprep.subr.bf16.mxu0 0
      %218 = vmatpush1.bf16.msra.mxu0 0
      %219 = vmatprep.subr.bf16.mxu0 0
      %220 = vmatpush1.bf16.msra.mxu0 0
      %221 = vmatprep.subr.bf16.mxu0 0
      %222 = vmatpush1.bf16.msra.mxu0 0
      %223 = vmatprep.subr.bf16.mxu0 0
      %224 = vmatpush1.bf16.msra.mxu0 0
      %225 = vmatprep.subr.bf16.mxu0 0
      %226 = vmatpush1.bf16.msra.mxu0 0
      %227 = vmatprep.subr.bf16.mxu0 0
      %228 = vmatpush1.bf16.msra.mxu0 0
      %229 = vmatprep.subr.bf16.mxu0 0
      %230 = vmatpush1.bf16.msra.mxu0 0
      %231 = vmatprep.subr.bf16.mxu0 0
      %232 = vmatpush1.bf16.msra.mxu0 %v215
      %233 = vmatprep.subr.bf16.mxu0 0
      %234 = vmatpush2.bf16.msra.mxu0 0
      %235 = vmatprep.subr.bf16.mxu0 0
      %236 = vmatpush2.bf16.msra.mxu0 0
      %237 = vmatprep.subr.bf16.mxu0 0
      %238 = vmatpush2.bf16.msra.mxu0 0
      %239 = vmatprep.subr.bf16.mxu0 0
      %240 = vmatpush2.bf16.msra.mxu0 0
      %241 = vmatprep.subr.bf16.mxu0 0
      %242 = vmatpush2.bf16.msra.mxu0 0
      %243 = vmatprep.subr.bf16.mxu0 0
      %244 = vmatpush2.bf16.msra.mxu0 0
      %245 = vmatprep.subr.bf16.mxu0 0
      %246 = vmatpush2.bf16.msra.mxu0 0
      %247 = vmatprep.subr.bf16.mxu0 0
      %248 = vmatpush2.bf16.msra.mxu0 0
      %249 = vmatprep.mubr.bf16.mxu0 0
      %250 = vmatmul.mubr.bf16.gmra.mxu0 %v202
      %v251 = vpop.f32.mrf.mxu0
      %v252 = vadd.f32 0.0, %v251
      %v253 = vpop.f32.mrf.mxu0
      %v254 = vpop.f32.mrf.mxu0
      %v255 = vadd.f32 0.0, %v254
      %v256 = vpop.f32.mrf.mxu0
      %257 = vmatprep.mubr.bf16.mxu0 0
      %258 = vmatmul.mubr.bf16.gmra.mxu0 %v205
      %v259 = vpop.f32.mrf.mxu0
      %v260 = vadd.f32 0.0, %v259
      %v261 = vpop.f32.mrf.mxu0
      %v262 = vpop.f32.mrf.mxu0
      %v263 = vadd.f32 0.0, %v262
      %v264 = vpop.f32.mrf.mxu0
      %265 = vmatprep.mubr.bf16.mxu0 0
      %266 = vmatmul.mubr.bf16.gmra.mxu0 %v208
      %v267 = vpop.f32.mrf.mxu0
      %v268 = vadd.f32 0.0, %v267
      %v269 = vpop.f32.mrf.mxu0
      %v270 = vpop.f32.mrf.mxu0
      %v271 = vadd.f32 0.0, %v270
      %v272 = vpop.f32.mrf.mxu0
      %273 = vmatprep.mubr.bf16.mxu0 0
      %274 = vmatmul.mubr.bf16.gmra.mxu0 %v211
      %v275 = vpop.f32.mrf.mxu0
      %v276 = vadd.f32 0.0, %v275
      %v277 = vpop.f32.mrf.mxu0
      %v278 = vpop.f32.mrf.mxu0
      %v279 = vadd.f32 0.0, %v278
      %v280 = vpop.f32.mrf.mxu0
      %281 = vdwg.mxu0
      %v283 = vsel %vm200, %v180, 0
      %v286 = vsel %vm200, %v181, 0
      %v289 = vsel %vm200, %v182, 0
      %v292 = vsel %vm200, %v183, 0
      %v295 = vsel %vm213, %v184, 0
      %297 = vmatprep.subr.bf16.mxu0 0
      %298 = vmatpush1.bf16.msra.mxu0 0
      %299 = vmatprep.subr.bf16.mxu0 0
      %300 = vmatpush1.bf16.msra.mxu0 0
      %301 = vmatprep.subr.bf16.mxu0 0
      %302 = vmatpush1.bf16.msra.mxu0 0
      %303 = vmatprep.subr.bf16.mxu0 0
      %304 = vmatpush1.bf16.msra.mxu0 0
      %305 = vmatprep.subr.bf16.mxu0 0
      %306 = vmatpush1.bf16.msra.mxu0 0
      %307 = vmatprep.subr.bf16.mxu0 0
      %308 = vmatpush1.bf16.msra.mxu0 0
      %309 = vmatprep.subr.bf16.mxu0 0
      %310 = vmatpush1.bf16.msra.mxu0 0
      %311 = vmatprep.subr.bf16.mxu0 0
      %312 = vmatpush1.bf16.msra.mxu0 %v295
      %313 = vmatprep.subr.bf16.mxu0 0
      %314 = vmatpush2.bf16.msra.mxu0 0
      %315 = vmatprep.subr.bf16.mxu0 0
      %316 = vmatpush2.bf16.msra.mxu0 0
      %317 = vmatprep.subr.bf16.mxu0 0
      %318 = vmatpush2.bf16.msra.mxu0 0
      %319 = vmatprep.subr.bf16.mxu0 0
      %320 = vmatpush2.bf16.msra.mxu0 0
      %321 = vmatprep.subr.bf16.mxu0 0
      %322 = vmatpush2.bf16.msra.mxu0 0
      %323 = vmatprep.subr.bf16.mxu0 0
      %324 = vmatpush2.bf16.msra.mxu0 0
      %325 = vmatprep.subr.bf16.mxu0 0
      %326 = vmatpush2.bf16.msra.mxu0 0
      %327 = vmatprep.subr.bf16.mxu0 0
      %328 = vmatpush2.bf16.msra.mxu0 0
      %329 = vmatprep.mubr.bf16.mxu0 0
      %330 = vmatmul.mubr.bf16.gmra.mxu0 %v283
      %v331 = vpop.f32.mrf.mxu0
      %v332 = vadd.f32 %v252, %v331
      %v333 = vpop.f32.mrf.mxu0
      %v334 = vpop.f32.mrf.mxu0
      %v335 = vadd.f32 %v255, %v334
      %v336 = vpop.f32.mrf.mxu0
      %337 = vmatprep.mubr.bf16.mxu0 0
      %338 = vmatmul.mubr.bf16.gmra.mxu0 %v286
      %v339 = vpop.f32.mrf.mxu0
      %v340 = vadd.f32 %v260, %v339
      %v341 = vpop.f32.mrf.mxu0
      %v342 = vpop.f32.mrf.mxu0
      %v343 = vadd.f32 %v263, %v342
      %v344 = vpop.f32.mrf.mxu0
      %345 = vmatprep.mubr.bf16.mxu0 0
      %346 = vmatmul.mubr.bf16.gmra.mxu0 %v289
      %v347 = vpop.f32.mrf.mxu0
      %v348 = vadd.f32 %v268, %v347
      %v349 = vpop.f32.mrf.mxu0
      %v350 = vpop.f32.mrf.mxu0
      %v351 = vadd.f32 %v271, %v350
      %v352 = vpop.f32.mrf.mxu0
      %353 = vmatprep.mubr.bf16.mxu0 0
      %354 = vmatmul.mubr.bf16.gmra.mxu0 %v292
      %v355 = vpop.f32.mrf.mxu0
      %v356 = vadd.f32 %v276, %v355
      %v357 = vpop.f32.mrf.mxu0
      %v358 = vpop.f32.mrf.mxu0
      %v359 = vadd.f32 %v279, %v358
      %v360 = vpop.f32.mrf.mxu0
      %361 = vdwg.mxu0
      %v362 = vld [vmem:[%s165 + $0x1] sm:$0xff]
      %v363 = vld [vmem:[%s165 + $0x11] sm:$0xff]
      %v364 = vld [vmem:[%s165 + $0x21] sm:$0xff]
      %v365 = vld [vmem:[%s165 + $0x31] sm:$0xff]
      %v366 = vld [vmem:[%s165 + $0x41] sm:$0xff]
      %v367 = vld [vmem:[%s165 + $0x51] sm:$0xff]
      %v368 = vld [vmem:[%s165 + $0x61] sm:$0xff]
      %v369 = vld [vmem:[%s165 + $0x71] sm:$0xff]
      %v370 = vpack.c.bf16 %v363, %v362
      %v371 = vpack.c.bf16 %v365, %v364
      %v372 = vpack.c.bf16 %v367, %v366
      %v373 = vpack.c.bf16 %v369, %v368
      %s374 = scalar_lea.vmem %s1, 8
      %v375 = vld [vmem:[%s374] sm:$0xf]
      %v377 = vsel %vm200, %v370, 0
      %v380 = vsel %vm200, %v371, 0
      %v383 = vsel %vm200, %v372, 0
      %v386 = vsel %vm200, %v373, 0
      %v389 = vsel %vm213, %v375, 0
      %391 = vmatprep.subr.bf16.mxu0 0
      %392 = vmatpush1.bf16.msra.mxu0 0
      %393 = vmatprep.subr.bf16.mxu0 0
      %394 = vmatpush1.bf16.msra.mxu0 0
      %395 = vmatprep.subr.bf16.mxu0 0
      %396 = vmatpush1.bf16.msra.mxu0 0
      %397 = vmatprep.subr.bf16.mxu0 0
      %398 = vmatpush1.bf16.msra.mxu0 0
      %399 = vmatprep.subr.bf16.mxu0 0
      %400 = vmatpush1.bf16.msra.mxu0 0
      %401 = vmatprep.subr.bf16.mxu0 0
      %402 = vmatpush1.bf16.msra.mxu0 0
      %403 = vmatprep.subr.bf16.mxu0 0
      %404 = vmatpush1.bf16.msra.mxu0 0
      %405 = vmatprep.subr.bf16.mxu0 0
      %406 = vmatpush1.bf16.msra.mxu0 %v389
      %407 = vmatprep.subr.bf16.mxu0 0
      %408 = vmatpush2.bf16.msra.mxu0 0
      %409 = vmatprep.subr.bf16.mxu0 0
      %410 = vmatpush2.bf16.msra.mxu0 0
      %411 = vmatprep.subr.bf16.mxu0 0
      %412 = vmatpush2.bf16.msra.mxu0 0
      %413 = vmatprep.subr.bf16.mxu0 0
      %414 = vmatpush2.bf16.msra.mxu0 0
      %415 = vmatprep.subr.bf16.mxu0 0
      %416 = vmatpush2.bf16.msra.mxu0 0
      %417 = vmatprep.subr.bf16.mxu0 0
      %418 = vmatpush2.bf16.msra.mxu0 0
      %419 = vmatprep.subr.bf16.mxu0 0
      %420 = vmatpush2.bf16.msra.mxu0 0
      %421 = vmatprep.subr.bf16.mxu0 0
      %422 = vmatpush2.bf16.msra.mxu0 0
      %423 = vmatprep.mubr.bf16.mxu0 0
      %424 = vmatmul.mubr.bf16.gmra.mxu0 %v377
      %v425 = vpop.f32.mrf.mxu0
      %v426 = vadd.f32 0.0, %v425
      %v427 = vpop.f32.mrf.mxu0
      %v428 = vpop.f32.mrf.mxu0
      %v429 = vadd.f32 0.0, %v428
      %v430 = vpop.f32.mrf.mxu0
      %431 = vmatprep.mubr.bf16.mxu0 0
      %432 = vmatmul.mubr.bf16.gmra.mxu0 %v380
      %v433 = vpop.f32.mrf.mxu0
      %v434 = vadd.f32 0.0, %v433
      %v435 = vpop.f32.mrf.mxu0
      %v436 = vpop.f32.mrf.mxu0
      %v437 = vadd.f32 0.0, %v436
      %v438 = vpop.f32.mrf.mxu0
      %439 = vmatprep.mubr.bf16.mxu0 0
      %440 = vmatmul.mubr.bf16.gmra.mxu0 %v383
      %v441 = vpop.f32.mrf.mxu0
      %v442 = vadd.f32 0.0, %v441
      %v443 = vpop.f32.mrf.mxu0
      %v444 = vpop.f32.mrf.mxu0
      %v445 = vadd.f32 0.0, %v444
      %v446 = vpop.f32.mrf.mxu0
      %447 = vmatprep.mubr.bf16.mxu0 0
      %448 = vmatmul.mubr.bf16.gmra.mxu0 %v386
      %v449 = vpop.f32.mrf.mxu0
      %v450 = vadd.f32 0.0, %v449
      %v451 = vpop.f32.mrf.mxu0
      %v452 = vpop.f32.mrf.mxu0
      %v453 = vadd.f32 0.0, %v452
      %v454 = vpop.f32.mrf.mxu0
      %455 = vdwg.mxu0
      %v456 = vadd.f32 %v332, %v426
      %v457 = vadd.f32 %v335, %v429
      %v458 = vadd.f32 %v340, %v434
      %v459 = vadd.f32 %v343, %v437
      %v460 = vadd.f32 %v348, %v442
      %v461 = vadd.f32 %v351, %v445
      %v462 = vadd.f32 %v356, %v450
      %v463 = vadd.f32 %v359, %v453
      %s464 = scalar_lea.vmem %s165, 288
      %v465 = vld [vmem:[%s464] sm:$0xff]
      %v466 = vld [vmem:[%s464 + $0x10] sm:$0xff]
      %v467 = vld [vmem:[%s464 + $0x20] sm:$0xff]
      %v468 = vld [vmem:[%s464 + $0x30] sm:$0xff]
      %v469 = vld [vmem:[%s464 + $0x40] sm:$0xff]
      %v470 = vld [vmem:[%s464 + $0x50] sm:$0xff]
      %v471 = vld [vmem:[%s464 + $0x60] sm:$0xff]
      %v472 = vld [vmem:[%s464 + $0x70] sm:$0xff]
      %v473 = vpack.c.bf16 %v466, %v465
      %v474 = vpack.c.bf16 %v468, %v467
      %v475 = vpack.c.bf16 %v470, %v469
      %v476 = vpack.c.bf16 %v472, %v471
      %s477 = scalar_lea.vmem %s1, 12
      %v478 = vld [vmem:[%s477] sm:$0xf]
      %v480 = vsel %vm200, %v473, 0
      %v483 = vsel %vm200, %v474, 0
      %v486 = vsel %vm200, %v475, 0
      %v489 = vsel %vm200, %v476, 0
      %v492 = vsel %vm213, %v478, 0
      %494 = vmatprep.subr.bf16.mxu0 0
      %495 = vmatpush1.bf16.msra.mxu0 0
      %496 = vmatprep.subr.bf16.mxu0 0
      %497 = vmatpush1.bf16.msra.mxu0 0
      %498 = vmatprep.subr.bf16.mxu0 0
      %499 = vmatpush1.bf16.msra.mxu0 0
      %500 = vmatprep.subr.bf16.mxu0 0
      %501 = vmatpush1.bf16.msra.mxu0 0
      %502 = vmatprep.subr.bf16.mxu0 0
      %503 = vmatpush1.bf16.msra.mxu0 0
      %504 = vmatprep.subr.bf16.mxu0 0
      %505 = vmatpush1.bf16.msra.mxu0 0
      %506 = vmatprep.subr.bf16.mxu0 0
      %507 = vmatpush1.bf16.msra.mxu0 0
      %508 = vmatprep.subr.bf16.mxu0 0
      %509 = vmatpush1.bf16.msra.mxu0 %v492
      %510 = vmatprep.subr.bf16.mxu0 0
      %511 = vmatpush2.bf16.msra.mxu0 0
      %512 = vmatprep.subr.bf16.mxu0 0
      %513 = vmatpush2.bf16.msra.mxu0 0
      %514 = vmatprep.subr.bf16.mxu0 0
      %515 = vmatpush2.bf16.msra.mxu0 0
      %516 = vmatprep.subr.bf16.mxu0 0
      %517 = vmatpush2.bf16.msra.mxu0 0
      %518 = vmatprep.subr.bf16.mxu0 0
      %519 = vmatpush2.bf16.msra.mxu0 0
      %520 = vmatprep.subr.bf16.mxu0 0
      %521 = vmatpush2.bf16.msra.mxu0 0
      %522 = vmatprep.subr.bf16.mxu0 0
      %523 = vmatpush2.bf16.msra.mxu0 0
      %524 = vmatprep.subr.bf16.mxu0 0
      %525 = vmatpush2.bf16.msra.mxu0 0
      %526 = vmatprep.mubr.bf16.mxu0 0
      %527 = vmatmul.mubr.bf16.gmra.mxu0 %v480
      %v528 = vpop.f32.mrf.mxu0
      %v529 = vadd.f32 0.0, %v528
      %v530 = vpop.f32.mrf.mxu0
      %v531 = vpop.f32.mrf.mxu0
      %v532 = vadd.f32 0.0, %v531
      %v533 = vpop.f32.mrf.mxu0
      %534 = vmatprep.mubr.bf16.mxu0 0
      %535 = vmatmul.mubr.bf16.gmra.mxu0 %v483
      %v536 = vpop.f32.mrf.mxu0
      %v537 = vadd.f32 0.0, %v536
      %v538 = vpop.f32.mrf.mxu0
      %v539 = vpop.f32.mrf.mxu0
      %v540 = vadd.f32 0.0, %v539
      %v541 = vpop.f32.mrf.mxu0
      %542 = vmatprep.mubr.bf16.mxu0 0
      %543 = vmatmul.mubr.bf16.gmra.mxu0 %v486
      %v544 = vpop.f32.mrf.mxu0
      %v545 = vadd.f32 0.0, %v544
      %v546 = vpop.f32.mrf.mxu0
      %v547 = vpop.f32.mrf.mxu0
      %v548 = vadd.f32 0.0, %v547
      %v549 = vpop.f32.mrf.mxu0
      %550 = vmatprep.mubr.bf16.mxu0 0
      %551 = vmatmul.mubr.bf16.gmra.mxu0 %v489
      %v552 = vpop.f32.mrf.mxu0
      %v553 = vadd.f32 0.0, %v552
      %v554 = vpop.f32.mrf.mxu0
      %v555 = vpop.f32.mrf.mxu0
      %v556 = vadd.f32 0.0, %v555
      %v557 = vpop.f32.mrf.mxu0
      %558 = vdwg.mxu0
      %v559 = vadd.f32 %v456, %v529
      %v560 = vadd.f32 %v457, %v532
      %v561 = vadd.f32 %v458, %v537
      %v562 = vadd.f32 %v459, %v540
      %v563 = vadd.f32 %v460, %v545
      %v564 = vadd.f32 %v461, %v548
      %v565 = vadd.f32 %v462, %v553
      %v566 = vadd.f32 %v463, %v556
      %s567 = scalar_lea.vmem %s165, 432
      %v568 = vld [vmem:[%s567] sm:$0xff]
      %v569 = vld [vmem:[%s567 + $0x10] sm:$0xff]
      %v570 = vld [vmem:[%s567 + $0x20] sm:$0xff]
      %v571 = vld [vmem:[%s567 + $0x30] sm:$0xff]
      %v572 = vld [vmem:[%s567 + $0x40] sm:$0xff]
      %v573 = vld [vmem:[%s567 + $0x50] sm:$0xff]
      %v574 = vld [vmem:[%s567 + $0x60] sm:$0xff]
      %v575 = vld [vmem:[%s567 + $0x70] sm:$0xff]
      %v576 = vpack.c.bf16 %v569, %v568
      %v577 = vpack.c.bf16 %v571, %v570
      %v578 = vpack.c.bf16 %v573, %v572
      %v579 = vpack.c.bf16 %v575, %v574
      %s580 = scalar_lea.vmem %s1, 16
      %v581 = vld [vmem:[%s580] sm:$0xf]
      %v583 = vsel %vm200, %v576, 0
      %v586 = vsel %vm200, %v577, 0
      %v589 = vsel %vm200, %v578, 0
      %v592 = vsel %vm200, %v579, 0
      %v595 = vsel %vm213, %v581, 0
      %597 = vmatprep.subr.bf16.mxu0 0
      %598 = vmatpush1.bf16.msra.mxu0 0
      %599 = vmatprep.subr.bf16.mxu0 0
      %600 = vmatpush1.bf16.msra.mxu0 0
      %601 = vmatprep.subr.bf16.mxu0 0
      %602 = vmatpush1.bf16.msra.mxu0 0
      %603 = vmatprep.subr.bf16.mxu0 0
      %604 = vmatpush1.bf16.msra.mxu0 0
      %605 = vmatprep.subr.bf16.mxu0 0
      %606 = vmatpush1.bf16.msra.mxu0 0
      %607 = vmatprep.subr.bf16.mxu0 0
      %608 = vmatpush1.bf16.msra.mxu0 0
      %609 = vmatprep.subr.bf16.mxu0 0
      %610 = vmatpush1.bf16.msra.mxu0 0
      %611 = vmatprep.subr.bf16.mxu0 0
      %612 = vmatpush1.bf16.msra.mxu0 %v595
      %613 = vmatprep.subr.bf16.mxu0 0
      %614 = vmatpush2.bf16.msra.mxu0 0
      %615 = vmatprep.subr.bf16.mxu0 0
      %616 = vmatpush2.bf16.msra.mxu0 0
      %617 = vmatprep.subr.bf16.mxu0 0
      %618 = vmatpush2.bf16.msra.mxu0 0
      %619 = vmatprep.subr.bf16.mxu0 0
      %620 = vmatpush2.bf16.msra.mxu0 0
      %621 = vmatprep.subr.bf16.mxu0 0
      %622 = vmatpush2.bf16.msra.mxu0 0
      %623 = vmatprep.subr.bf16.mxu0 0
      %624 = vmatpush2.bf16.msra.mxu0 0
      %625 = vmatprep.subr.bf16.mxu0 0
      %626 = vmatpush2.bf16.msra.mxu0 0
      %627 = vmatprep.subr.bf16.mxu0 0
      %628 = vmatpush2.bf16.msra.mxu0 0
      %629 = vmatprep.mubr.bf16.mxu0 0
      %630 = vmatmul.mubr.bf16.gmra.mxu0 %v583
      %v631 = vpop.f32.mrf.mxu0
      %v632 = vadd.f32 0.0, %v631
      %v633 = vpop.f32.mrf.mxu0
      %v634 = vpop.f32.mrf.mxu0
      %v635 = vadd.f32 0.0, %v634
      %v636 = vpop.f32.mrf.mxu0
      %637 = vmatprep.mubr.bf16.mxu0 0
      %638 = vmatmul.mubr.bf16.gmra.mxu0 %v586
      %v639 = vpop.f32.mrf.mxu0
      %v640 = vadd.f32 0.0, %v639
      %v641 = vpop.f32.mrf.mxu0
      %v642 = vpop.f32.mrf.mxu0
      %v643 = vadd.f32 0.0, %v642
      %v644 = vpop.f32.mrf.mxu0
      %645 = vmatprep.mubr.bf16.mxu0 0
      %646 = vmatmul.mubr.bf16.gmra.mxu0 %v589
      %v647 = vpop.f32.mrf.mxu0
      %v648 = vadd.f32 0.0, %v647
      %v649 = vpop.f32.mrf.mxu0
      %v650 = vpop.f32.mrf.mxu0
      %v651 = vadd.f32 0.0, %v650
      %v652 = vpop.f32.mrf.mxu0
      %653 = vmatprep.mubr.bf16.mxu0 0
      %654 = vmatmul.mubr.bf16.gmra.mxu0 %v592
      %v655 = vpop.f32.mrf.mxu0
      %v656 = vadd.f32 0.0, %v655
      %v657 = vpop.f32.mrf.mxu0
      %v658 = vpop.f32.mrf.mxu0
      %v659 = vadd.f32 0.0, %v658
      %v660 = vpop.f32.mrf.mxu0
      %661 = vdwg.mxu0
      %v662 = vadd.f32 %v559, %v632
      %v663 = vadd.f32 %v560, %v635
      %v664 = vadd.f32 %v561, %v640
      %v665 = vadd.f32 %v562, %v643
      %v666 = vadd.f32 %v563, %v648
      %v667 = vadd.f32 %v564, %v651
      %v668 = vadd.f32 %v565, %v656
      %v669 = vadd.f32 %v566, %v659
      %v670 = vld [vmem:[%s464 + $0x1] sm:$0xff]
      %v671 = vld [vmem:[%s464 + $0x11] sm:$0xff]
      %v672 = vld [vmem:[%s464 + $0x21] sm:$0xff]
      %v673 = vld [vmem:[%s464 + $0x31] sm:$0xff]
      %v674 = vld [vmem:[%s464 + $0x41] sm:$0xff]
      %v675 = vld [vmem:[%s464 + $0x51] sm:$0xff]
      %v676 = vld [vmem:[%s464 + $0x61] sm:$0xff]
      %v677 = vld [vmem:[%s464 + $0x71] sm:$0xff]
      %v678 = vpack.c.bf16 %v671, %v670
      %v679 = vpack.c.bf16 %v673, %v672
      %v680 = vpack.c.bf16 %v675, %v674
      %v681 = vpack.c.bf16 %v677, %v676
      %s682 = scalar_lea.vmem %s1, 20
      %v683 = vld [vmem:[%s682] sm:$0xf]
      %v685 = vsel %vm200, %v678, 0
      %v688 = vsel %vm200, %v679, 0
      %v691 = vsel %vm200, %v680, 0
      %v694 = vsel %vm200, %v681, 0
      %v697 = vsel %vm213, %v683, 0
      %699 = vmatprep.subr.bf16.mxu0 0
      %700 = vmatpush1.bf16.msra.mxu0 0
      %701 = vmatprep.subr.bf16.mxu0 0
      %702 = vmatpush1.bf16.msra.mxu0 0
      %703 = vmatprep.subr.bf16.mxu0 0
      %704 = vmatpush1.bf16.msra.mxu0 0
      %705 = vmatprep.subr.bf16.mxu0 0
      %706 = vmatpush1.bf16.msra.mxu0 0
      %707 = vmatprep.subr.bf16.mxu0 0
      %708 = vmatpush1.bf16.msra.mxu0 0
      %709 = vmatprep.subr.bf16.mxu0 0
      %710 = vmatpush1.bf16.msra.mxu0 0
      %711 = vmatprep.subr.bf16.mxu0 0
      %712 = vmatpush1.bf16.msra.mxu0 0
      %713 = vmatprep.subr.bf16.mxu0 0
      %714 = vmatpush1.bf16.msra.mxu0 %v697
      %715 = vmatprep.subr.bf16.mxu0 0
      %716 = vmatpush2.bf16.msra.mxu0 0
      %717 = vmatprep.subr.bf16.mxu0 0
      %718 = vmatpush2.bf16.msra.mxu0 0
      %719 = vmatprep.subr.bf16.mxu0 0
      %720 = vmatpush2.bf16.msra.mxu0 0
      %721 = vmatprep.subr.bf16.mxu0 0
      %722 = vmatpush2.bf16.msra.mxu0 0
      %723 = vmatprep.subr.bf16.mxu0 0
      %724 = vmatpush2.bf16.msra.mxu0 0
      %725 = vmatprep.subr.bf16.mxu0 0
      %726 = vmatpush2.bf16.msra.mxu0 0
      %727 = vmatprep.subr.bf16.mxu0 0
      %728 = vmatpush2.bf16.msra.mxu0 0
      %729 = vmatprep.subr.bf16.mxu0 0
      %730 = vmatpush2.bf16.msra.mxu0 0
      %731 = vmatprep.mubr.bf16.mxu0 0
      %732 = vmatmul.mubr.bf16.gmra.mxu0 %v685
      %v733 = vpop.f32.mrf.mxu0
      %v734 = vadd.f32 0.0, %v733
      %v735 = vpop.f32.mrf.mxu0
      %v736 = vpop.f32.mrf.mxu0
      %v737 = vadd.f32 0.0, %v736
      %v738 = vpop.f32.mrf.mxu0
      %739 = vmatprep.mubr.bf16.mxu0 0
      %740 = vmatmul.mubr.bf16.gmra.mxu0 %v688
      %v741 = vpop.f32.mrf.mxu0
      %v742 = vadd.f32 0.0, %v741
      %v743 = vpop.f32.mrf.mxu0
      %v744 = vpop.f32.mrf.mxu0
      %v745 = vadd.f32 0.0, %v744
      %v746 = vpop.f32.mrf.mxu0
      %747 = vmatprep.mubr.bf16.mxu0 0
      %748 = vmatmul.mubr.bf16.gmra.mxu0 %v691
      %v749 = vpop.f32.mrf.mxu0
      %v750 = vadd.f32 0.0, %v749
      %v751 = vpop.f32.mrf.mxu0
      %v752 = vpop.f32.mrf.mxu0
      %v753 = vadd.f32 0.0, %v752
      %v754 = vpop.f32.mrf.mxu0
      %755 = vmatprep.mubr.bf16.mxu0 0
      %756 = vmatmul.mubr.bf16.gmra.mxu0 %v694
      %v757 = vpop.f32.mrf.mxu0
      %v758 = vadd.f32 0.0, %v757
      %v759 = vpop.f32.mrf.mxu0
      %v760 = vpop.f32.mrf.mxu0
      %v761 = vadd.f32 0.0, %v760
      %v762 = vpop.f32.mrf.mxu0
      %763 = vdwg.mxu0
      %v764 = vadd.f32 %v662, %v734
      %v765 = vadd.f32 %v663, %v737
      %v766 = vadd.f32 %v664, %v742
      %v767 = vadd.f32 %v665, %v745
      %v768 = vadd.f32 %v666, %v750
      %v769 = vadd.f32 %v667, %v753
      %v770 = vadd.f32 %v668, %v758
      %v771 = vadd.f32 %v669, %v761
      %s772 = scalar_lea.vmem %s165, 16
      %v773 = vld [vmem:[%s772] sm:$0xff]
      %v774 = vld [vmem:[%s772 + $0x10] sm:$0xff]
      %v775 = vld [vmem:[%s772 + $0x20] sm:$0xff]
      %v776 = vld [vmem:[%s772 + $0x30] sm:$0xff]
      %v777 = vld [vmem:[%s772 + $0x40] sm:$0xff]
      %v778 = vld [vmem:[%s772 + $0x50] sm:$0xff]
      %v779 = vld [vmem:[%s772 + $0x60] sm:$0xff]
      %v780 = vld [vmem:[%s772 + $0x70] sm:$0xff]
      %v781 = vpack.c.bf16 %v774, %v773
      %v782 = vpack.c.bf16 %v776, %v775
      %v783 = vpack.c.bf16 %v778, %v777
      %v784 = vpack.c.bf16 %v780, %v779
      %s785 = scalar_lea.vmem %s1, 24
      %v786 = vld [vmem:[%s785] sm:$0xf]
      %v788 = vsel %vm200, %v781, 0
      %v791 = vsel %vm200, %v782, 0
      %v794 = vsel %vm200, %v783, 0
      %v797 = vsel %vm200, %v784, 0
      %v800 = vsel %vm213, %v786, 0
      %802 = vmatprep.subr.bf16.mxu0 0
      %803 = vmatpush1.bf16.msra.mxu0 0
      %804 = vmatprep.subr.bf16.mxu0 0
      %805 = vmatpush1.bf16.msra.mxu0 0
      %806 = vmatprep.subr.bf16.mxu0 0
      %807 = vmatpush1.bf16.msra.mxu0 0
      %808 = vmatprep.subr.bf16.mxu0 0
      %809 = vmatpush1.bf16.msra.mxu0 0
      %810 = vmatprep.subr.bf16.mxu0 0
      %811 = vmatpush1.bf16.msra.mxu0 0
      %812 = vmatprep.subr.bf16.mxu0 0
      %813 = vmatpush1.bf16.msra.mxu0 0
      %814 = vmatprep.subr.bf16.mxu0 0
      %815 = vmatpush1.bf16.msra.mxu0 0
      %816 = vmatprep.subr.bf16.mxu0 0
      %817 = vmatpush1.bf16.msra.mxu0 %v800
      %818 = vmatprep.subr.bf16.mxu0 0
      %819 = vmatpush2.bf16.msra.mxu0 0
      %820 = vmatprep.subr.bf16.mxu0 0
      %821 = vmatpush2.bf16.msra.mxu0 0
      %822 = vmatprep.subr.bf16.mxu0 0
      %823 = vmatpush2.bf16.msra.mxu0 0
      %824 = vmatprep.subr.bf16.mxu0 0
      %825 = vmatpush2.bf16.msra.mxu0 0
      %826 = vmatprep.subr.bf16.mxu0 0
      %827 = vmatpush2.bf16.msra.mxu0 0
      %828 = vmatprep.subr.bf16.mxu0 0
      %829 = vmatpush2.bf16.msra.mxu0 0
      %830 = vmatprep.subr.bf16.mxu0 0
      %831 = vmatpush2.bf16.msra.mxu0 0
      %832 = vmatprep.subr.bf16.mxu0 0
      %833 = vmatpush2.bf16.msra.mxu0 0
      %834 = vmatprep.mubr.bf16.mxu0 0
      %835 = vmatmul.mubr.bf16.gmra.mxu0 %v788
      %v836 = vpop.f32.mrf.mxu0
      %v837 = vadd.f32 0.0, %v836
      %v838 = vpop.f32.mrf.mxu0
      %v839 = vpop.f32.mrf.mxu0
      %v840 = vadd.f32 0.0, %v839
      %v841 = vpop.f32.mrf.mxu0
      %842 = vmatprep.mubr.bf16.mxu0 0
      %843 = vmatmul.mubr.bf16.gmra.mxu0 %v791
      %v844 = vpop.f32.mrf.mxu0
      %v845 = vadd.f32 0.0, %v844
      %v846 = vpop.f32.mrf.mxu0
      %v847 = vpop.f32.mrf.mxu0
      %v848 = vadd.f32 0.0, %v847
      %v849 = vpop.f32.mrf.mxu0
      %850 = vmatprep.mubr.bf16.mxu0 0
      %851 = vmatmul.mubr.bf16.gmra.mxu0 %v794
      %v852 = vpop.f32.mrf.mxu0
      %v853 = vadd.f32 0.0, %v852
      %v854 = vpop.f32.mrf.mxu0
      %v855 = vpop.f32.mrf.mxu0
      %v856 = vadd.f32 0.0, %v855
      %v857 = vpop.f32.mrf.mxu0
      %858 = vmatprep.mubr.bf16.mxu0 0
      %859 = vmatmul.mubr.bf16.gmra.mxu0 %v797
      %v860 = vpop.f32.mrf.mxu0
      %v861 = vadd.f32 0.0, %v860
      %v862 = vpop.f32.mrf.mxu0
      %v863 = vpop.f32.mrf.mxu0
      %v864 = vadd.f32 0.0, %v863
      %v865 = vpop.f32.mrf.mxu0
      %866 = vdwg.mxu0
      %v867 = vadd.f32 %v764, %v837
      %v868 = vadd.f32 %v765, %v840
      %v869 = vadd.f32 %v766, %v845
      %v870 = vadd.f32 %v767, %v848
      %v871 = vadd.f32 %v768, %v853
      %v872 = vadd.f32 %v769, %v856
      %v873 = vadd.f32 %v770, %v861
      %v874 = vadd.f32 %v771, %v864
      %s875 = scalar_lea.vmem %s165, 160
      %v876 = vld [vmem:[%s875] sm:$0xff]
      %v877 = vld [vmem:[%s875 + $0x10] sm:$0xff]
      %v878 = vld [vmem:[%s875 + $0x20] sm:$0xff]
      %v879 = vld [vmem:[%s875 + $0x30] sm:$0xff]
      %v880 = vld [vmem:[%s875 + $0x40] sm:$0xff]
      %v881 = vld [vmem:[%s875 + $0x50] sm:$0xff]
      %v882 = vld [vmem:[%s875 + $0x60] sm:$0xff]
      %v883 = vld [vmem:[%s875 + $0x70] sm:$0xff]
      %v884 = vpack.c.bf16 %v877, %v876
      %v885 = vpack.c.bf16 %v879, %v878
      %v886 = vpack.c.bf16 %v881, %v880
      %v887 = vpack.c.bf16 %v883, %v882
      %s888 = scalar_lea.vmem %s1, 28
      %v889 = vld [vmem:[%s888] sm:$0xf]
      %v891 = vsel %vm200, %v884, 0
      %v894 = vsel %vm200, %v885, 0
      %v897 = vsel %vm200, %v886, 0
      %v900 = vsel %vm200, %v887, 0
      %v903 = vsel %vm213, %v889, 0
      %905 = vmatprep.subr.bf16.mxu0 0
      %906 = vmatpush1.bf16.msra.mxu0 0
      %907 = vmatprep.subr.bf16.mxu0 0
      %908 = vmatpush1.bf16.msra.mxu0 0
      %909 = vmatprep.subr.bf16.mxu0 0
      %910 = vmatpush1.bf16.msra.mxu0 0
      %911 = vmatprep.subr.bf16.mxu0 0
      %912 = vmatpush1.bf16.msra.mxu0 0
      %913 = vmatprep.subr.bf16.mxu0 0
      %914 = vmatpush1.bf16.msra.mxu0 0
      %915 = vmatprep.subr.bf16.mxu0 0
      %916 = vmatpush1.bf16.msra.mxu0 0
      %917 = vmatprep.subr.bf16.mxu0 0
      %918 = vmatpush1.bf16.msra.mxu0 0
      %919 = vmatprep.subr.bf16.mxu0 0
      %920 = vmatpush1.bf16.msra.mxu0 %v903
      %921 = vmatprep.subr.bf16.mxu0 0
      %922 = vmatpush2.bf16.msra.mxu0 0
      %923 = vmatprep.subr.bf16.mxu0 0
      %924 = vmatpush2.bf16.msra.mxu0 0
      %925 = vmatprep.subr.bf16.mxu0 0
      %926 = vmatpush2.bf16.msra.mxu0 0
      %927 = vmatprep.subr.bf16.mxu0 0
      %928 = vmatpush2.bf16.msra.mxu0 0
      %929 = vmatprep.subr.bf16.mxu0 0
      %930 = vmatpush2.bf16.msra.mxu0 0
      %931 = vmatprep.subr.bf16.mxu0 0
      %932 = vmatpush2.bf16.msra.mxu0 0
      %933 = vmatprep.subr.bf16.mxu0 0
      %934 = vmatpush2.bf16.msra.mxu0 0
      %935 = vmatprep.subr.bf16.mxu0 0
      %936 = vmatpush2.bf16.msra.mxu0 0
      %937 = vmatprep.mubr.bf16.mxu0 0
      %938 = vmatmul.mubr.bf16.gmra.mxu0 %v891
      %v939 = vpop.f32.mrf.mxu0
      %v940 = vadd.f32 0.0, %v939
      %v941 = vpop.f32.mrf.mxu0
      %v942 = vpop.f32.mrf.mxu0
      %v943 = vadd.f32 0.0, %v942
      %v944 = vpop.f32.mrf.mxu0
      %945 = vmatprep.mubr.bf16.mxu0 0
      %946 = vmatmul.mubr.bf16.gmra.mxu0 %v894
      %v947 = vpop.f32.mrf.mxu0
      %v948 = vadd.f32 0.0, %v947
      %v949 = vpop.f32.mrf.mxu0
      %v950 = vpop.f32.mrf.mxu0
      %v951 = vadd.f32 0.0, %v950
      %v952 = vpop.f32.mrf.mxu0
      %953 = vmatprep.mubr.bf16.mxu0 0
      %954 = vmatmul.mubr.bf16.gmra.mxu0 %v897
      %v955 = vpop.f32.mrf.mxu0
      %v956 = vadd.f32 0.0, %v955
      %v957 = vpop.f32.mrf.mxu0
      %v958 = vpop.f32.mrf.mxu0
      %v959 = vadd.f32 0.0, %v958
      %v960 = vpop.f32.mrf.mxu0
      %961 = vmatprep.mubr.bf16.mxu0 0
      %962 = vmatmul.mubr.bf16.gmra.mxu0 %v900
      %v963 = vpop.f32.mrf.mxu0
      %v964 = vadd.f32 0.0, %v963
      %v965 = vpop.f32.mrf.mxu0
      %v966 = vpop.f32.mrf.mxu0
      %v967 = vadd.f32 0.0, %v966
      %v968 = vpop.f32.mrf.mxu0
      %969 = vdwg.mxu0
      %v970 = vadd.f32 %v867, %v940
      %v971 = vadd.f32 %v868, %v943
      %v972 = vadd.f32 %v869, %v948
      %v973 = vadd.f32 %v870, %v951
      %v974 = vadd.f32 %v871, %v956
      %v975 = vadd.f32 %v872, %v959
      %v976 = vadd.f32 %v873, %v964
      %v977 = vadd.f32 %v874, %v967
      %v978 = vld [vmem:[%s772 + $0x1] sm:$0xff]
      %v979 = vld [vmem:[%s772 + $0x11] sm:$0xff]
      %v980 = vld [vmem:[%s772 + $0x21] sm:$0xff]
      %v981 = vld [vmem:[%s772 + $0x31] sm:$0xff]
      %v982 = vld [vmem:[%s772 + $0x41] sm:$0xff]
      %v983 = vld [vmem:[%s772 + $0x51] sm:$0xff]
      %v984 = vld [vmem:[%s772 + $0x61] sm:$0xff]
      %v985 = vld [vmem:[%s772 + $0x71] sm:$0xff]
      %v986 = vpack.c.bf16 %v979, %v978
      %v987 = vpack.c.bf16 %v981, %v980
      %v988 = vpack.c.bf16 %v983, %v982
      %v989 = vpack.c.bf16 %v985, %v984
      %s990 = scalar_lea.vmem %s1, 32
      %v991 = vld [vmem:[%s990] sm:$0xf]
      %v993 = vsel %vm200, %v986, 0
      %v996 = vsel %vm200, %v987, 0
      %v999 = vsel %vm200, %v988, 0
      %v1002 = vsel %vm200, %v989, 0
      %v1005 = vsel %vm213, %v991, 0
      %1007 = vmatprep.subr.bf16.mxu0 0
      %1008 = vmatpush1.bf16.msra.mxu0 0
      %1009 = vmatprep.subr.bf16.mxu0 0
      %1010 = vmatpush1.bf16.msra.mxu0 0
      %1011 = vmatprep.subr.bf16.mxu0 0
      %1012 = vmatpush1.bf16.msra.mxu0 0
      %1013 = vmatprep.subr.bf16.mxu0 0
      %1014 = vmatpush1.bf16.msra.mxu0 0
      %1015 = vmatprep.subr.bf16.mxu0 0
      %1016 = vmatpush1.bf16.msra.mxu0 0
      %1017 = vmatprep.subr.bf16.mxu0 0
      %1018 = vmatpush1.bf16.msra.mxu0 0
      %1019 = vmatprep.subr.bf16.mxu0 0
      %1020 = vmatpush1.bf16.msra.mxu0 0
      %1021 = vmatprep.subr.bf16.mxu0 0
      %1022 = vmatpush1.bf16.msra.mxu0 %v1005
      %1023 = vmatprep.subr.bf16.mxu0 0
      %1024 = vmatpush2.bf16.msra.mxu0 0
      %1025 = vmatprep.subr.bf16.mxu0 0
      %1026 = vmatpush2.bf16.msra.mxu0 0
      %1027 = vmatprep.subr.bf16.mxu0 0
      %1028 = vmatpush2.bf16.msra.mxu0 0
      %1029 = vmatprep.subr.bf16.mxu0 0
      %1030 = vmatpush2.bf16.msra.mxu0 0
      %1031 = vmatprep.subr.bf16.mxu0 0
      %1032 = vmatpush2.bf16.msra.mxu0 0
      %1033 = vmatprep.subr.bf16.mxu0 0
      %1034 = vmatpush2.bf16.msra.mxu0 0
      %1035 = vmatprep.subr.bf16.mxu0 0
      %1036 = vmatpush2.bf16.msra.mxu0 0
      %1037 = vmatprep.subr.bf16.mxu0 0
      %1038 = vmatpush2.bf16.msra.mxu0 0
      %1039 = vmatprep.mubr.bf16.mxu0 0
      %1040 = vmatmul.mubr.bf16.gmra.mxu0 %v993
      %v1041 = vpop.f32.mrf.mxu0
      %v1042 = vadd.f32 0.0, %v1041
      %v1043 = vpop.f32.mrf.mxu0
      %v1044 = vpop.f32.mrf.mxu0
      %v1045 = vadd.f32 0.0, %v1044
      %v1046 = vpop.f32.mrf.mxu0
      %1047 = vmatprep.mubr.bf16.mxu0 0
      %1048 = vmatmul.mubr.bf16.gmra.mxu0 %v996
      %v1049 = vpop.f32.mrf.mxu0
      %v1050 = vadd.f32 0.0, %v1049
      %v1051 = vpop.f32.mrf.mxu0
      %v1052 = vpop.f32.mrf.mxu0
      %v1053 = vadd.f32 0.0, %v1052
      %v1054 = vpop.f32.mrf.mxu0
      %1055 = vmatprep.mubr.bf16.mxu0 0
      %1056 = vmatmul.mubr.bf16.gmra.mxu0 %v999
      %v1057 = vpop.f32.mrf.mxu0
      %v1058 = vadd.f32 0.0, %v1057
      %v1059 = vpop.f32.mrf.mxu0
      %v1060 = vpop.f32.mrf.mxu0
      %v1061 = vadd.f32 0.0, %v1060
      %v1062 = vpop.f32.mrf.mxu0
      %1063 = vmatprep.mubr.bf16.mxu0 0
      %1064 = vmatmul.mubr.bf16.gmra.mxu0 %v1002
      %v1065 = vpop.f32.mrf.mxu0
      %v1066 = vadd.f32 0.0, %v1065
      %v1067 = vpop.f32.mrf.mxu0
      %v1068 = vpop.f32.mrf.mxu0
      %v1069 = vadd.f32 0.0, %v1068
      %v1070 = vpop.f32.mrf.mxu0
      %1071 = vdwg.mxu0
      %v1072 = vadd.f32 %v970, %v1042
      %v1073 = vadd.f32 %v971, %v1045
      %v1074 = vadd.f32 %v972, %v1050
      %v1075 = vadd.f32 %v973, %v1053
      %v1076 = vadd.f32 %v974, %v1058
      %v1077 = vadd.f32 %v975, %v1061
      %v1078 = vadd.f32 %v976, %v1066
      %v1079 = vadd.f32 %v977, %v1069
      %v1080 = vld [vmem:[%s2] sm:$0x1]
      %v1082 = vlaneseq
      %v1083 = vshrl.u32 %v1082, 7
      %v1084 = vsub.s32 0, %v1083
      %v1085 = vrot.slane %v1080, %v1084
      %v1087 = vadd.f32 %v1072, %v1085
      %v1088 = vadd.f32 %v1073, %v1085
      %v1089 = vadd.f32 %v1074, %v1085
      %v1090 = vadd.f32 %v1075, %v1085
      %v1091 = vadd.f32 %v1076, %v1085
      %v1092 = vadd.f32 %v1077, %v1085
      %v1093 = vadd.f32 %v1078, %v1085
      %v1094 = vadd.f32 %v1079, %v1085
      %v1095 = vmax.f32 %v1087, 0.0
      %v1096 = vmax.f32 %v1088, 0.0
      %v1097 = vmax.f32 %v1089, 0.0
      %v1098 = vmax.f32 %v1090, 0.0
      %v1099 = vmax.f32 %v1091, 0.0
      %v1100 = vmax.f32 %v1092, 0.0
      %v1101 = vmax.f32 %v1093, 0.0
      %v1102 = vmax.f32 %v1094, 0.0
      %v1103 = vpack.c.bf16 %v1096, %v1095
      %v1104 = vpack.c.bf16 %v1098, %v1097
      %v1105 = vpack.c.bf16 %v1100, %v1099
      %v1106 = vpack.c.bf16 %v1102, %v1101
      %v1111 = vunpack.c.l.b16 %v1103
      %v1112 = vunpack.c.h.b16 %v1103
      %v1113 = vunpack.c.l.b16 %v1104
      %v1114 = vunpack.c.h.b16 %v1104
      %v1115 = vunpack.c.l.b16 %v1105
      %v1116 = vunpack.c.h.b16 %v1105
      %v1117 = vunpack.c.l.b16 %v1106
      %v1118 = vunpack.c.h.b16 %v1106
      %v1119 = vpack.c.b16 %v1111, %v1111
      %v1120 = vpack.c.b16 %v1112, %v1112
      %v1121 = vpack.c.b16 %v1113, %v1113
      %v1122 = vpack.c.b16 %v1114, %v1114
      %v1123 = vpack.c.b16 %v1115, %v1115
      %v1124 = vpack.c.b16 %v1116, %v1116
      %v1125 = vpack.c.b16 %v1117, %v1117
      %v1126 = vpack.c.b16 %v1118, %v1118
      %vm1135 = vcmask 60416
      %1136 = vst.msk [vmem:[%s170] sm:$0xf] %vm1135, %v1119
      %1137 = vst.msk [vmem:[%s170 + $0x4] sm:$0xf] %vm1135, %v1120
      %1138 = vst.msk [vmem:[%s170 + $0x8] sm:$0xf] %vm1135, %v1121
      %1139 = vst.msk [vmem:[%s170 + $0xc] sm:$0xf] %vm1135, %v1122
      %1140 = vst.msk [vmem:[%s170 + $0x10] sm:$0xf] %vm1135, %v1123
      %1141 = vst.msk [vmem:[%s170 + $0x14] sm:$0xf] %vm1135, %v1124
      %1142 = vst.msk [vmem:[%s170 + $0x18] sm:$0xf] %vm1135, %v1125
      %1143 = vst.msk [vmem:[%s170 + $0x1c] sm:$0xf] %vm1135, %v1126
      %p1144 = scmp.lt.s32.totalorder %s14, 1
      %s1145 = scalar_select %p1144, %s14, 1
      %s1146 = smul.addr %s1145, 8
      %s1147 = smul.addr %s1146, 4
      %s1148 = scalar_lea.vmem %s3, %s1147
      // Predicated region
      $region33: #{bottleneck_forward.4} parent=31 // pred_check
        %p1149 = pneg %p100
      $region34: #{bottleneck_forward.4} parent=31 // pred_check_branch
        %1151 = sbr.rel (%p1149) target = $region36
      $region35: #{bottleneck_forward.4} parent=31 // pred_region
        _
      $region36: #{bottleneck_forward.4} parent=31 // pred_fallthru
        _
    $region32: #{bottleneck_forward.4} parent=5 // pred_fallthru
      _
    %p1152 = scmp.le.s32.totalorder 2, %s9
    // Predicated region
    $region37: #{bottleneck_forward.4} parent=5 // pred_check
      %p1153 = pneg %p1152
    $region38: #{bottleneck_forward.4} parent=5 // pred_check_branch
      %1155 = sbr.rel (%p1153) target = $region40
    $region39: #{bottleneck_forward.4} parent=5 // pred_region
      %s1156 = ssub.s32 %s9, 2
      // Predicated region
      $region41: #{bottleneck_forward.4} parent=39 // pred_check
        %p1157 = pneg %p106
      $region42: #{bottleneck_forward.4} parent=39 // pred_check_branch
        %1159 = sbr.rel (%p1157) target = $region44
      $region43: #{bottleneck_forward.4} parent=39 // pred_region
        %p1160 = scmp.lt.s32.totalorder %s15, 1
        %s1161 = scalar_select %p1160, %s15, 1
        %s1162 = smul.addr %s1161, 8
        %s1163 = smul.addr %s1162, 4
        %s1164 = scalar_lea.vmem %s3, %s1163
      $region44: #{bottleneck_forward.4} parent=39 // pred_fallthru
        _
    $region40: #{bottleneck_forward.4} parent=5 // pred_fallthru
      _
  $region6: #{bottleneck_forward.4} parent=0 // loop_footer
    %s13 = sadd.s32 1, %s9
  $region7: #{bottleneck_forward.4} parent=0 // loop_footer_branch
    %8 = sbr.rel target = $region3
  $region8: #{bottleneck_forward.4} parent=0 // loop_exit
    _

</llo_original>
